<compile_context>
chip_gen: v7x
topology: tpu7x:2x2x1
jax: 0.10.0
libtpu: 0.0.40
codegen_flags: <defaults>
</compile_context>

<pallas_src>
import functools

import jax
import jax.numpy as jnp
from jax.experimental import pallas as pl
from jax.experimental.pallas import tpu as pltpu

LN_EPS = 1e-5
LANE = 128
MATMUL_DTYPE = jnp.bfloat16   # MXU operand dtype; accumulation is always f32.


def _round_up(x, m):
    return ((x + m - 1) // m) * m


# --------------------------------------------------------------------------- #
# Kernel
# --------------------------------------------------------------------------- #
def _encoder(x, w1, b1, w2, b2, gamma, beta, ln_mask, inv_n):
    """Linear -> ReLU -> (Dropout=id) -> Linear -> LayerNorm (masked to real lanes).

    Matmul operands are bf16; accumulation and all elementwise math are f32.
    """
    h = jnp.dot(x, w1, preferred_element_type=jnp.float32) + b1
    h = jnp.maximum(h, 0.0)
    y = jnp.dot(h.astype(w2.dtype), w2, preferred_element_type=jnp.float32) + b2
    # Padded lanes of y are exactly zero (zero-padded w2 columns / b2), so the
    # plain lane-sum already gives the correct mean; variance still needs the
    # lane mask so padded (0 - mu)^2 terms don't leak in.
    mu = jnp.sum(y, axis=-1, keepdims=True) * inv_n
    centered = jnp.where(ln_mask, y - mu, 0.0)
    var = jnp.sum(centered * centered, axis=-1, keepdims=True) * inv_n
    y_hat = centered * jax.lax.rsqrt(var + LN_EPS)        # rsqrt -> EUP slot
    return y_hat * gamma + beta                           # padded gamma/beta = 0


def fusion_kernel(
    # activations (per batch tile)
    text_ref, audio_ref, video_ref,
    # text encoder params
    tw1_ref, tb1_ref, tw2_ref, tb2_ref, tg_ref, tbt_ref,
    # audio encoder params
    aw1_ref, ab1_ref, aw2_ref, ab2_ref, ag_ref, abt_ref,
    # video encoder params (w1 tiled over S and pre-divided by S)
    vw1_ref, vb1_ref, vw2_ref, vb2_ref, vg_ref, vbt_ref,
    # classifier params (first layer split per modality -> no concatenate)
    cw1t_ref, cw1a_ref, cw1v_ref, cb1_ref, cw2_ref, cb2_ref,
    # output
    out_ref,
    *, real_out_dim,
):
    tb = text_ref.shape[0]
    o_p = tg_ref.shape[1]

    # Shared LayerNorm lane mask: computed once per grid step and reused by the
    # three encoders (JAX does not CSE broadcast_in_dim).
    lane_idx = jax.lax.broadcasted_iota(jnp.int32, (tb, o_p), 1)
    ln_mask = lane_idx < real_out_dim
    inv_n = 1.0 / float(real_out_dim)

    t_enc = _encoder(text_ref[...], tw1_ref[...], tb1_ref[...], tw2_ref[...],
                     tb2_ref[...], tg_ref[...], tbt_ref[...], ln_mask, inv_n)
    a_enc = _encoder(audio_ref[...], aw1_ref[...], ab1_ref[...], aw2_ref[...],
                     ab2_ref[...], ag_ref[...], abt_ref[...], ln_mask, inv_n)
    # video_ref is (tb, round_up(S*32,128)); its dot against the S-tiled
    # (vw1/S) weight performs mean-pooling + projection in one MXU contraction.
    v_enc = _encoder(video_ref[...], vw1_ref[...], vb1_ref[...], vw2_ref[...],
                     vb2_ref[...], vg_ref[...], vbt_ref[...], ln_mask, inv_n)

    mm_dt = cw1t_ref.dtype
    h = (jnp.dot(t_enc.astype(mm_dt), cw1t_ref[...], preferred_element_type=jnp.float32)
         + jnp.dot(a_enc.astype(mm_dt), cw1a_ref[...], preferred_element_type=jnp.float32)
         + jnp.dot(v_enc.astype(mm_dt), cw1v_ref[...], preferred_element_type=jnp.float32)
         + cb1_ref[...])
    h = jnp.maximum(h, 0.0)
    logits = (jnp.dot(h.astype(cw2_ref.dtype), cw2_ref[...],
                      preferred_element_type=jnp.float32) + cb2_ref[...])
    out_ref[...] = logits.astype(out_ref.dtype)


# --------------------------------------------------------------------------- #
# Host-side wrapper
# --------------------------------------------------------------------------- #
def _pad_mat(w, rows, cols, dtype):
    w = jnp.asarray(w, jnp.float32)
    return jnp.pad(w, ((0, rows - w.shape[0]), (0, cols - w.shape[1]))).astype(dtype)


def _pad_vec(b, cols, dtype=jnp.float32):
    b = jnp.asarray(b, jnp.float32)
    return jnp.pad(b, (0, cols - b.shape[0])).reshape(1, cols).astype(dtype)


def early_fusion_forward(text, audio, video, params, matmul_dtype=MATMUL_DTYPE):
    """Runs the whole EarlyFusionModel forward as one batch-gridded Pallas kernel."""
    B, text_dim = text.shape
    audio_dim = audio.shape[1]
    S, video_in = video.shape[1], video.shape[2]
    hidden_dim = params["tw1"].shape[1]
    output_dim = params["tw2"].shape[1]
    video_hidden = params["vw1"].shape[1]
    num_classes = params["cw2"].shape[1]

    dt_p = _round_up(text_dim, LANE)
    da_p = _round_up(audio_dim, LANE)
    sv = S * video_in
    sv_p = _round_up(sv, LANE)          # video flattened BEFORE padding (no 4x blowup)
    h_p = _round_up(hidden_dim, LANE)
    vh_p = _round_up(video_hidden, LANE)
    o_p = _round_up(output_dim, LANE)
    c_p = _round_up(num_classes, LANE)

    # Batch tile: 256 rows fills the 256-deep MXU on v6e/v7x; 128 on v5* (4x128
    # MXU).  Batch axis is "parallel" -> sharded across TensorCores.
    kind = jax.devices()[0].device_kind.lower()
    tb_cap = 128 if "v5" in kind else 256
    tb = tb_cap if B >= tb_cap else _round_up(min(B, tb_cap), 8)
    b_p = _round_up(B, tb)
    grid = (b_p // tb,)

    f32 = jnp.float32

    # ---- lane-dense, zero-padded activations (matmul dtype) ----
    text_p = _pad_mat(text, b_p, dt_p, matmul_dtype)
    audio_p = _pad_mat(audio, b_p, da_p, matmul_dtype)
    video_flat = jnp.asarray(video, f32).reshape(B, sv)
    video_p = _pad_mat(video_flat, b_p, sv_p, matmul_dtype)

    # ---- zero-padded weights (matmul weights in bf16, biases/LN params in f32) ----
    tw1 = _pad_mat(params["tw1"], dt_p, h_p, matmul_dtype)
    tb1 = _pad_vec(params["tb1"], h_p)
    tw2 = _pad_mat(params["tw2"], h_p, o_p, matmul_dtype)
    tb2 = _pad_vec(params["tb2"], o_p)
    tg = _pad_vec(params["tg"], o_p)
    tbt = _pad_vec(params["tbt"], o_p)

    aw1 = _pad_mat(params["aw1"], da_p, h_p, matmul_dtype)
    ab1 = _pad_vec(params["ab1"], h_p)
    aw2 = _pad_mat(params["aw2"], h_p, o_p, matmul_dtype)
    ab2 = _pad_vec(params["ab2"], o_p)
    ag = _pad_vec(params["ag"], o_p)
    abt = _pad_vec(params["abt"], o_p)

    # Mean-pool fold: tile the UNPADDED (32, vh) weight (pre-divided by S) over S,
    # then pad the contraction dim to match the packed video layout.
    vw1_tiled = jnp.tile(jnp.asarray(params["vw1"], f32) / float(S), (S, 1))
    vw1 = _pad_mat(vw1_tiled, sv_p, vh_p, matmul_dtype)
    vb1 = _pad_vec(params["vb1"], vh_p)
    vw2 = _pad_mat(params["vw2"], vh_p, o_p, matmul_dtype)
    vb2 = _pad_vec(params["vb2"], o_p)
    vg = _pad_vec(params["vg"], o_p)
    vbt = _pad_vec(params["vbt"], o_p)

    # Split the classifier's first layer along its input axis so the kernel never
    # concatenates along the lane axis: combined @ cw1 == sum of per-modality dots.
    cw1 = jnp.asarray(params["cw1"], f32)
    cw1_t = _pad_mat(cw1[:output_dim], o_p, h_p, matmul_dtype)
    cw1_a = _pad_mat(cw1[output_dim:2 * output_dim], o_p, h_p, matmul_dtype)
    cw1_v = _pad_mat(cw1[2 * output_dim:], o_p, h_p, matmul_dtype)
    cb1 = _pad_vec(params["cb1"], h_p)
    cw2 = _pad_mat(params["cw2"], h_p, c_p, matmul_dtype)
    cb2 = _pad_vec(params["cb2"], c_p)

    weights = [
        tw1, tb1, tw2, tb2, tg, tbt,
        aw1, ab1, aw2, ab2, ag, abt,
        vw1, vb1, vw2, vb2, vg, vbt,
        cw1_t, cw1_a, cw1_v, cb1, cw2, cb2,
    ]

    def _act_spec(cols):
        return pl.BlockSpec((tb, cols), lambda i: (i, 0))

    def _resident_spec(arr):
        # Full-array block, constant block index -> weight stays VMEM-resident.
        # Single-buffered: no point double-buffering a block whose index never
        # changes, and it halves resident-weight VMEM.
        try:
            return pl.BlockSpec(arr.shape, lambda i: (0,) * arr.ndim,
                                pipeline_mode=pl.Buffered(1))
        except (TypeError, ValueError, AttributeError):
            # Fallback for Pallas versions without pipeline_mode / Buffered(1).
            return pl.BlockSpec(arr.shape, lambda i: (0,) * arr.ndim)

    in_specs = [_act_spec(dt_p), _act_spec(da_p), _act_spec(sv_p)]
    in_specs += [_resident_spec(w) for w in weights]

    # Explicit scoped-VMEM budget: resident weights + double-buffered activation
    # tiles + output, with 2x headroom for intermediates / layout slack.
    def _nbytes(a):
        return int(a.size) * a.dtype.itemsize
    act_itemsize = jnp.dtype(matmul_dtype).itemsize
    weight_bytes = sum(_nbytes(w) for w in weights)
    stream_bytes = 2 * tb * (dt_p + da_p + sv_p) * act_itemsize
    out_bytes = 2 * tb * c_p * 4
    est = weight_bytes + stream_bytes + out_bytes
    vmem_limit = int(min(64 * 2 ** 20, max(16 * 2 ** 20, 2 * est)))

    kernel = functools.partial(fusion_kernel, real_out_dim=output_dim)

    out_p = pl.pallas_call(
        kernel,
        out_shape=jax.ShapeDtypeStruct((b_p, c_p), jnp.float32),
        grid=grid,
        in_specs=in_specs,
        out_specs=pl.BlockSpec((tb, c_p), lambda i: (i, 0)),
        compiler_params=pltpu.CompilerParams(
            dimension_semantics=("parallel",),
            vmem_limit_bytes=vmem_limit,
        ),
    )(text_p, audio_p, video_p, *weights)

    return out_p[:B, :num_classes]


# --------------------------------------------------------------------------- #
# Parameters + pure-JAX reference
# --------------------------------------------------------------------------- #
def init_params(key, text_dim, audio_dim, hidden_dim, output_dim, num_classes):
    """Deterministic synthetic parameter init (shapes follow the PyTorch module)."""
    video_in = 32                    # hard-coded in EarlyFusionModel.__init__
    video_hidden = hidden_dim // 4
    combined_dim = output_dim * 3

    keys = jax.random.split(key, 16)
    scale = 0.05

    def w(k, shape):
        return (scale * jax.random.normal(k, shape)).astype(jnp.float32)

    return {
        # text encoder
        "tw1": w(keys[0], (text_dim, hidden_dim)),
        "tb1": w(keys[1], (hidden_dim,)),
        "tw2": w(keys[2], (hidden_dim, output_dim)),
        "tb2": w(keys[3], (output_dim,)),
        "tg": jnp.ones((output_dim,), jnp.float32),
        "tbt": jnp.zeros((output_dim,), jnp.float32),
        # audio encoder
        "aw1": w(keys[4], (audio_dim, hidden_dim)),
        "ab1": w(keys[5], (hidden_dim,)),
        "aw2": w(keys[6], (hidden_dim, output_dim)),
        "ab2": w(keys[7], (output_dim,)),
        "ag": jnp.ones((output_dim,), jnp.float32),
        "abt": jnp.zeros((output_dim,), jnp.float32),
        # video encoder
        "vw1": w(keys[8], (video_in, video_hidden)),
        "vb1": w(keys[9], (video_hidden,)),
        "vw2": w(keys[10], (video_hidden, output_dim)),
        "vb2": w(keys[11], (output_dim,)),
        "vg": jnp.ones((output_dim,), jnp.float32),
        "vbt": jnp.zeros((output_dim,), jnp.float32),
        # classifier
        "cw1": w(keys[12], (combined_dim, hidden_dim)),
        "cb1": w(keys[13], (hidden_dim,)),
        "cw2": w(keys[14], (hidden_dim, num_classes)),
        "cb2": w(keys[15], (num_classes,)),
    }


def reference_forward(text, audio, video, params):
    """Pure-JAX f32 reference matching the PyTorch forward (inference semantics)."""
    prec = jax.lax.Precision.HIGHEST

    def mm(a, b):
        return jnp.dot(a, b, precision=prec)

    def enc(x, w1, b1, w2, b2, g, bt):
        h = jnp.maximum(mm(x, w1) + b1, 0.0)
        y = mm(h, w2) + b2
        mu = jnp.mean(y, axis=-1, keepdims=True)
        var = jnp.mean((y - mu) ** 2, axis=-1, keepdims=True)
        return (y - mu) * jax.lax.rsqrt(var + LN_EPS) * g + bt

    t = enc(text, params["tw1"], params["tb1"], params["tw2"], params["tb2"],
            params["tg"], params["tbt"])
    a = enc(audio, params["aw1"], params["ab1"], params["aw2"], params["ab2"],
            params["ag"], params["abt"])
    v = enc(jnp.mean(video, axis=1), params["vw1"], params["vb1"], params["vw2"],
            params["vb2"], params["vg"], params["vbt"])
    comb = jnp.concatenate([t, a, v], axis=1)
    h = jnp.maximum(mm(comb, params["cw1"]) + params["cb1"], 0.0)
    return mm(h, params["cw2"]) + params["cb2"]


if __name__ == "__main__":
    # Small, forward-consistent shapes.
    B = 2
    TEXT_DIM = 64
    AUDIO_DIM = 48
    VIDEO_SEQ = 8
    VIDEO_FEAT = 32          # video encoder input_dim is hard-coded to 32
    HIDDEN_DIM = 32
    OUTPUT_DIM = 16
    NUM_CLASSES = 2

    root = jax.random.PRNGKey(0)
    k_text, k_audio, k_video, k_params = jax.random.split(root, 4)

    text = jax.random.normal(k_text, (B, TEXT_DIM), jnp.float32)
    audio = jax.random.normal(k_audio, (B, AUDIO_DIM), jnp.float32)
    video = jax.random.normal(k_video, (B, VIDEO_SEQ, VIDEO_FEAT), jnp.float32)

    params = init_params(k_params, TEXT_DIM, AUDIO_DIM, HIDDEN_DIM, OUTPUT_DIM, NUM_CLASSES)

    logits = early_fusion_forward(text, audio, video, params)
    jax.block_until_ready(logits)
    assert logits.shape == (B, NUM_CLASSES), logits.shape

    # bf16 matmul operands (f32 accumulation) vs. an f32 reference: expected
    # deviation is ~1e-3 on O(0.1) logits, so a 1e-2-level tolerance is ample.
    ref = reference_forward(text, audio, video, params)
    assert bool(jnp.allclose(logits, ref, atol=2e-2, rtol=1e-2)), (
        "kernel/reference mismatch")

    print("KERNEL_OK")
</pallas_src>

<mosaic_0001>
module attributes {stable_mosaic.version = 11 : i64} {
  func.func @fusion_kernel(%arg0: i32, %arg1: memref<8x128xbf16, #tpu.memory_space<vmem>>, %arg2: memref<8x128xbf16, #tpu.memory_space<vmem>>, %arg3: memref<8x256xbf16, #tpu.memory_space<vmem>>, %arg4: memref<128x128xbf16, #tpu.memory_space<vmem>>, %arg5: memref<1x128xf32, #tpu.memory_space<vmem>>, %arg6: memref<128x128xbf16, #tpu.memory_space<vmem>>, %arg7: memref<1x128xf32, #tpu.memory_space<vmem>>, %arg8: memref<1x128xf32, #tpu.memory_space<vmem>>, %arg9: memref<1x128xf32, #tpu.memory_space<vmem>>, %arg10: memref<128x128xbf16, #tpu.memory_space<vmem>>, %arg11: memref<1x128xf32, #tpu.memory_space<vmem>>, %arg12: memref<128x128xbf16, #tpu.memory_space<vmem>>, %arg13: memref<1x128xf32, #tpu.memory_space<vmem>>, %arg14: memref<1x128xf32, #tpu.memory_space<vmem>>, %arg15: memref<1x128xf32, #tpu.memory_space<vmem>>, %arg16: memref<256x128xbf16, #tpu.memory_space<vmem>>, %arg17: memref<1x128xf32, #tpu.memory_space<vmem>>, %arg18: memref<128x128xbf16, #tpu.memory_space<vmem>>, %arg19: memref<1x128xf32, #tpu.memory_space<vmem>>, %arg20: memref<1x128xf32, #tpu.memory_space<vmem>>, %arg21: memref<1x128xf32, #tpu.memory_space<vmem>>, %arg22: memref<128x128xbf16, #tpu.memory_space<vmem>>, %arg23: memref<128x128xbf16, #tpu.memory_space<vmem>>, %arg24: memref<128x128xbf16, #tpu.memory_space<vmem>>, %arg25: memref<1x128xf32, #tpu.memory_space<vmem>>, %arg26: memref<128x128xbf16, #tpu.memory_space<vmem>>, %arg27: memref<1x128xf32, #tpu.memory_space<vmem>>, %arg28: memref<8x128xf32, #tpu.memory_space<vmem>>) attributes {dimension_semantics = [#tpu.dimension_semantics<parallel>], iteration_bounds = array<i64: 1>, scalar_prefetch = 0 : i64, scratch_operands = 0 : i64, tpu.core_type = #tpu.core_type<tc>, window_params = [{transform_indices = @transform_0, window_bounds = array<i64: 8, 128>}, {transform_indices = @transform_1, window_bounds = array<i64: 8, 128>}, {transform_indices = @transform_2, window_bounds = array<i64: 8, 256>}, {pipeline_mode = #tpu.pipeline_mode<synchronous>, transform_indices = @transform_3, window_bounds = array<i64: 128, 128>}, {pipeline_mode = #tpu.pipeline_mode<synchronous>, transform_indices = @transform_4, window_bounds = array<i64: 1, 128>}, {pipeline_mode = #tpu.pipeline_mode<synchronous>, transform_indices = @transform_5, window_bounds = array<i64: 128, 128>}, {pipeline_mode = #tpu.pipeline_mode<synchronous>, transform_indices = @transform_6, window_bounds = array<i64: 1, 128>}, {pipeline_mode = #tpu.pipeline_mode<synchronous>, transform_indices = @transform_7, window_bounds = array<i64: 1, 128>}, {pipeline_mode = #tpu.pipeline_mode<synchronous>, transform_indices = @transform_8, window_bounds = array<i64: 1, 128>}, {pipeline_mode = #tpu.pipeline_mode<synchronous>, transform_indices = @transform_9, window_bounds = array<i64: 128, 128>}, {pipeline_mode = #tpu.pipeline_mode<synchronous>, transform_indices = @transform_10, window_bounds = array<i64: 1, 128>}, {pipeline_mode = #tpu.pipeline_mode<synchronous>, transform_indices = @transform_11, window_bounds = array<i64: 128, 128>}, {pipeline_mode = #tpu.pipeline_mode<synchronous>, transform_indices = @transform_12, window_bounds = array<i64: 1, 128>}, {pipeline_mode = #tpu.pipeline_mode<synchronous>, transform_indices = @transform_13, window_bounds = array<i64: 1, 128>}, {pipeline_mode = #tpu.pipeline_mode<synchronous>, transform_indices = @transform_14, window_bounds = array<i64: 1, 128>}, {pipeline_mode = #tpu.pipeline_mode<synchronous>, transform_indices = @transform_15, window_bounds = array<i64: 256, 128>}, {pipeline_mode = #tpu.pipeline_mode<synchronous>, transform_indices = @transform_16, window_bounds = array<i64: 1, 128>}, {pipeline_mode = #tpu.pipeline_mode<synchronous>, transform_indices = @transform_17, window_bounds = array<i64: 128, 128>}, {pipeline_mode = #tpu.pipeline_mode<synchronous>, transform_indices = @transform_18, window_bounds = array<i64: 1, 128>}, {pipeline_mode = #tpu.pipeline_mode<synchronous>, transform_indices = @transform_19, window_bounds = array<i64: 1, 128>}, {pipeline_mode = #tpu.pipeline_mode<synchronous>, transform_indices = @transform_20, window_bounds = array<i64: 1, 128>}, {pipeline_mode = #tpu.pipeline_mode<synchronous>, transform_indices = @transform_21, window_bounds = array<i64: 128, 128>}, {pipeline_mode = #tpu.pipeline_mode<synchronous>, transform_indices = @transform_22, window_bounds = array<i64: 128, 128>}, {pipeline_mode = #tpu.pipeline_mode<synchronous>, transform_indices = @transform_23, window_bounds = array<i64: 128, 128>}, {pipeline_mode = #tpu.pipeline_mode<synchronous>, transform_indices = @transform_24, window_bounds = array<i64: 1, 128>}, {pipeline_mode = #tpu.pipeline_mode<synchronous>, transform_indices = @transform_25, window_bounds = array<i64: 128, 128>}, {pipeline_mode = #tpu.pipeline_mode<synchronous>, transform_indices = @transform_26, window_bounds = array<i64: 1, 128>}, {transform_indices = @transform_27, window_bounds = array<i64: 8, 128>}]} {
    %0 = tpu.iota {dimensions = array<i32: 1>} : vector<8x128xi32>
    %c16_i32 = arith.constant 16 : i32
    %1 = vector.broadcast %c16_i32 : i32 to vector<8x128xi32>
    %2 = arith.cmpi slt, %0, %1 : vector<8x128xi32>
    %c0 = arith.constant 0 : index
    %c0_0 = arith.constant 0 : index
    %3 = vector.load %arg1[%c0, %c0_0] : memref<8x128xbf16, #tpu.memory_space<vmem>>, vector<8x128xbf16>
    %c0_1 = arith.constant 0 : index
    %c0_2 = arith.constant 0 : index
    %4 = vector.load %arg4[%c0_1, %c0_2] : memref<128x128xbf16, #tpu.memory_space<vmem>>, vector<128x128xbf16>
    %c0_3 = arith.constant 0 : index
    %c0_4 = arith.constant 0 : index
    %5 = vector.load %arg5[%c0_3, %c0_4] : memref<1x128xf32, #tpu.memory_space<vmem>>, vector<1x128xf32>
    %c0_5 = arith.constant 0 : index
    %c0_6 = arith.constant 0 : index
    %6 = vector.load %arg6[%c0_5, %c0_6] : memref<128x128xbf16, #tpu.memory_space<vmem>>, vector<128x128xbf16>
    %c0_7 = arith.constant 0 : index
    %c0_8 = arith.constant 0 : index
    %7 = vector.load %arg7[%c0_7, %c0_8] : memref<1x128xf32, #tpu.memory_space<vmem>>, vector<1x128xf32>
    %c0_9 = arith.constant 0 : index
    %c0_10 = arith.constant 0 : index
    %8 = vector.load %arg8[%c0_9, %c0_10] : memref<1x128xf32, #tpu.memory_space<vmem>>, vector<1x128xf32>
    %c0_11 = arith.constant 0 : index
    %c0_12 = arith.constant 0 : index
    %9 = vector.load %arg9[%c0_11, %c0_12] : memref<1x128xf32, #tpu.memory_space<vmem>>, vector<1x128xf32>
    %cst = arith.constant dense<0.000000e+00> : vector<8x128xf32>
    %10 = tpu.matmul %3, %4, %cst {dimension_numbers = #tpu.dot_dimension_numbers<[1], [0], [0], [1], [0, 0, 1, 1], [], []>} : vector<8x128xbf16>, vector<128x128xbf16>, vector<8x128xf32> -> vector<8x128xf32>
    %11 = vector.broadcast %5 : vector<1x128xf32> to vector<8x128xf32>
    %12 = arith.addf %10, %11 : vector<8x128xf32>
    %cst_13 = arith.constant 0.000000e+00 : f32
    %13 = vector.broadcast %cst_13 : f32 to vector<8x128xf32>
    %14 = arith.maximumf %12, %13 : vector<8x128xf32>
    %15 = arith.truncf %14 : vector<8x128xf32> to vector<8x128xbf16>
    %cst_14 = arith.constant dense<0.000000e+00> : vector<8x128xf32>
    %16 = tpu.matmul %15, %6, %cst_14 {dimension_numbers = #tpu.dot_dimension_numbers<[1], [0], [0], [1], [0, 0, 1, 1], [], []>} : vector<8x128xbf16>, vector<128x128xbf16>, vector<8x128xf32> -> vector<8x128xf32>
    %17 = vector.broadcast %7 : vector<1x128xf32> to vector<8x128xf32>
    %18 = arith.addf %16, %17 : vector<8x128xf32>
    %cst_15 = arith.constant dense<0.000000e+00> : vector<8xf32>
    %19 = vector.multi_reduction <add>, %18, %cst_15 [1] : vector<8x128xf32> to vector<8xf32>
    %20 = vector.shape_cast %19 : vector<8xf32> to vector<8x1xf32>
    %cst_16 = arith.constant 6.250000e-02 : f32
    %21 = vector.broadcast %cst_16 : f32 to vector<8x1xf32>
    %22 = arith.mulf %20, %21 : vector<8x1xf32>
    %23 = vector.broadcast %22 : vector<8x1xf32> to vector<8x128xf32>
    %24 = arith.subf %18, %23 : vector<8x128xf32>
    %cst_17 = arith.constant 0.000000e+00 : f32
    %25 = vector.broadcast %cst_17 : f32 to vector<8x128xf32>
    %26 = arith.select %2, %24, %25 : vector<8x128xi1>, vector<8x128xf32>
    %27 = arith.mulf %26, %26 : vector<8x128xf32>
    %cst_18 = arith.constant dense<0.000000e+00> : vector<8xf32>
    %28 = vector.multi_reduction <add>, %27, %cst_18 [1] : vector<8x128xf32> to vector<8xf32>
    %29 = vector.shape_cast %28 : vector<8xf32> to vector<8x1xf32>
    %cst_19 = arith.constant 6.250000e-02 : f32
    %30 = vector.broadcast %cst_19 : f32 to vector<8x1xf32>
    %31 = arith.mulf %29, %30 : vector<8x1xf32>
    %cst_20 = arith.constant 9.99999974E-6 : f32
    %32 = vector.broadcast %cst_20 : f32 to vector<8x1xf32>
    %33 = arith.addf %31, %32 : vector<8x1xf32>
    %34 = math.rsqrt %33 : vector<8x1xf32>
    %35 = vector.broadcast %34 : vector<8x1xf32> to vector<8x128xf32>
    %36 = arith.mulf %26, %35 : vector<8x128xf32>
    %37 = vector.broadcast %8 : vector<1x128xf32> to vector<8x128xf32>
    %38 = arith.mulf %36, %37 : vector<8x128xf32>
    %39 = vector.broadcast %9 : vector<1x128xf32> to vector<8x128xf32>
    %40 = arith.addf %38, %39 : vector<8x128xf32>
    %c0_21 = arith.constant 0 : index
    %c0_22 = arith.constant 0 : index
    %41 = vector.load %arg2[%c0_21, %c0_22] : memref<8x128xbf16, #tpu.memory_space<vmem>>, vector<8x128xbf16>
    %c0_23 = arith.constant 0 : index
    %c0_24 = arith.constant 0 : index
    %42 = vector.load %arg10[%c0_23, %c0_24] : memref<128x128xbf16, #tpu.memory_space<vmem>>, vector<128x128xbf16>
    %c0_25 = arith.constant 0 : index
    %c0_26 = arith.constant 0 : index
    %43 = vector.load %arg11[%c0_25, %c0_26] : memref<1x128xf32, #tpu.memory_space<vmem>>, vector<1x128xf32>
    %c0_27 = arith.constant 0 : index
    %c0_28 = arith.constant 0 : index
    %44 = vector.load %arg12[%c0_27, %c0_28] : memref<128x128xbf16, #tpu.memory_space<vmem>>, vector<128x128xbf16>
    %c0_29 = arith.constant 0 : index
    %c0_30 = arith.constant 0 : index
    %45 = vector.load %arg13[%c0_29, %c0_30] : memref<1x128xf32, #tpu.memory_space<vmem>>, vector<1x128xf32>
    %c0_31 = arith.constant 0 : index
    %c0_32 = arith.constant 0 : index
    %46 = vector.load %arg14[%c0_31, %c0_32] : memref<1x128xf32, #tpu.memory_space<vmem>>, vector<1x128xf32>
    %c0_33 = arith.constant 0 : index
    %c0_34 = arith.constant 0 : index
    %47 = vector.load %arg15[%c0_33, %c0_34] : memref<1x128xf32, #tpu.memory_space<vmem>>, vector<1x128xf32>
    %cst_35 = arith.constant dense<0.000000e+00> : vector<8x128xf32>
    %48 = tpu.matmul %41, %42, %cst_35 {dimension_numbers = #tpu.dot_dimension_numbers<[1], [0], [0], [1], [0, 0, 1, 1], [], []>} : vector<8x128xbf16>, vector<128x128xbf16>, vector<8x128xf32> -> vector<8x128xf32>
    %49 = vector.broadcast %43 : vector<1x128xf32> to vector<8x128xf32>
    %50 = arith.addf %48, %49 : vector<8x128xf32>
    %cst_36 = arith.constant 0.000000e+00 : f32
    %51 = vector.broadcast %cst_36 : f32 to vector<8x128xf32>
    %52 = arith.maximumf %50, %51 : vector<8x128xf32>
    %53 = arith.truncf %52 : vector<8x128xf32> to vector<8x128xbf16>
    %cst_37 = arith.constant dense<0.000000e+00> : vector<8x128xf32>
    %54 = tpu.matmul %53, %44, %cst_37 {dimension_numbers = #tpu.dot_dimension_numbers<[1], [0], [0], [1], [0, 0, 1, 1], [], []>} : vector<8x128xbf16>, vector<128x128xbf16>, vector<8x128xf32> -> vector<8x128xf32>
    %55 = vector.broadcast %45 : vector<1x128xf32> to vector<8x128xf32>
    %56 = arith.addf %54, %55 : vector<8x128xf32>
    %cst_38 = arith.constant dense<0.000000e+00> : vector<8xf32>
    %57 = vector.multi_reduction <add>, %56, %cst_38 [1] : vector<8x128xf32> to vector<8xf32>
    %58 = vector.shape_cast %57 : vector<8xf32> to vector<8x1xf32>
    %cst_39 = arith.constant 6.250000e-02 : f32
    %59 = vector.broadcast %cst_39 : f32 to vector<8x1xf32>
    %60 = arith.mulf %58, %59 : vector<8x1xf32>
    %61 = vector.broadcast %60 : vector<8x1xf32> to vector<8x128xf32>
    %62 = arith.subf %56, %61 : vector<8x128xf32>
    %cst_40 = arith.constant 0.000000e+00 : f32
    %63 = vector.broadcast %cst_40 : f32 to vector<8x128xf32>
    %64 = arith.select %2, %62, %63 : vector<8x128xi1>, vector<8x128xf32>
    %65 = arith.mulf %64, %64 : vector<8x128xf32>
    %cst_41 = arith.constant dense<0.000000e+00> : vector<8xf32>
    %66 = vector.multi_reduction <add>, %65, %cst_41 [1] : vector<8x128xf32> to vector<8xf32>
    %67 = vector.shape_cast %66 : vector<8xf32> to vector<8x1xf32>
    %cst_42 = arith.constant 6.250000e-02 : f32
    %68 = vector.broadcast %cst_42 : f32 to vector<8x1xf32>
    %69 = arith.mulf %67, %68 : vector<8x1xf32>
    %cst_43 = arith.constant 9.99999974E-6 : f32
    %70 = vector.broadcast %cst_43 : f32 to vector<8x1xf32>
    %71 = arith.addf %69, %70 : vector<8x1xf32>
    %72 = math.rsqrt %71 : vector<8x1xf32>
    %73 = vector.broadcast %72 : vector<8x1xf32> to vector<8x128xf32>
    %74 = arith.mulf %64, %73 : vector<8x128xf32>
    %75 = vector.broadcast %46 : vector<1x128xf32> to vector<8x128xf32>
    %76 = arith.mulf %74, %75 : vector<8x128xf32>
    %77 = vector.broadcast %47 : vector<1x128xf32> to vector<8x128xf32>
    %78 = arith.addf %76, %77 : vector<8x128xf32>
    %c0_44 = arith.constant 0 : index
    %c0_45 = arith.constant 0 : index
    %79 = vector.load %arg3[%c0_44, %c0_45] : memref<8x256xbf16, #tpu.memory_space<vmem>>, vector<8x256xbf16>
    %c0_46 = arith.constant 0 : index
    %c0_47 = arith.constant 0 : index
    %80 = vector.load %arg16[%c0_46, %c0_47] : memref<256x128xbf16, #tpu.memory_space<vmem>>, vector<256x128xbf16>
    %c0_48 = arith.constant 0 : index
    %c0_49 = arith.constant 0 : index
    %81 = vector.load %arg17[%c0_48, %c0_49] : memref<1x128xf32, #tpu.memory_space<vmem>>, vector<1x128xf32>
    %c0_50 = arith.constant 0 : index
    %c0_51 = arith.constant 0 : index
    %82 = vector.load %arg18[%c0_50, %c0_51] : memref<128x128xbf16, #tpu.memory_space<vmem>>, vector<128x128xbf16>
    %c0_52 = arith.constant 0 : index
    %c0_53 = arith.constant 0 : index
    %83 = vector.load %arg19[%c0_52, %c0_53] : memref<1x128xf32, #tpu.memory_space<vmem>>, vector<1x128xf32>
    %c0_54 = arith.constant 0 : index
    %c0_55 = arith.constant 0 : index
    %84 = vector.load %arg20[%c0_54, %c0_55] : memref<1x128xf32, #tpu.memory_space<vmem>>, vector<1x128xf32>
    %c0_56 = arith.constant 0 : index
    %c0_57 = arith.constant 0 : index
    %85 = vector.load %arg21[%c0_56, %c0_57] : memref<1x128xf32, #tpu.memory_space<vmem>>, vector<1x128xf32>
    %cst_58 = arith.constant dense<0.000000e+00> : vector<8x128xf32>
    %86 = tpu.matmul %79, %80, %cst_58 {dimension_numbers = #tpu.dot_dimension_numbers<[1], [0], [0], [1], [0, 0, 1, 1], [], []>} : vector<8x256xbf16>, vector<256x128xbf16>, vector<8x128xf32> -> vector<8x128xf32>
    %87 = vector.broadcast %81 : vector<1x128xf32> to vector<8x128xf32>
    %88 = arith.addf %86, %87 : vector<8x128xf32>
    %cst_59 = arith.constant 0.000000e+00 : f32
    %89 = vector.broadcast %cst_59 : f32 to vector<8x128xf32>
    %90 = arith.maximumf %88, %89 : vector<8x128xf32>
    %91 = arith.truncf %90 : vector<8x128xf32> to vector<8x128xbf16>
    %cst_60 = arith.constant dense<0.000000e+00> : vector<8x128xf32>
    %92 = tpu.matmul %91, %82, %cst_60 {dimension_numbers = #tpu.dot_dimension_numbers<[1], [0], [0], [1], [0, 0, 1, 1], [], []>} : vector<8x128xbf16>, vector<128x128xbf16>, vector<8x128xf32> -> vector<8x128xf32>
    %93 = vector.broadcast %83 : vector<1x128xf32> to vector<8x128xf32>
    %94 = arith.addf %92, %93 : vector<8x128xf32>
    %cst_61 = arith.constant dense<0.000000e+00> : vector<8xf32>
    %95 = vector.multi_reduction <add>, %94, %cst_61 [1] : vector<8x128xf32> to vector<8xf32>
    %96 = vector.shape_cast %95 : vector<8xf32> to vector<8x1xf32>
    %cst_62 = arith.constant 6.250000e-02 : f32
    %97 = vector.broadcast %cst_62 : f32 to vector<8x1xf32>
    %98 = arith.mulf %96, %97 : vector<8x1xf32>
    %99 = vector.broadcast %98 : vector<8x1xf32> to vector<8x128xf32>
    %100 = arith.subf %94, %99 : vector<8x128xf32>
    %cst_63 = arith.constant 0.000000e+00 : f32
    %101 = vector.broadcast %cst_63 : f32 to vector<8x128xf32>
    %102 = arith.select %2, %100, %101 : vector<8x128xi1>, vector<8x128xf32>
    %103 = arith.mulf %102, %102 : vector<8x128xf32>
    %cst_64 = arith.constant dense<0.000000e+00> : vector<8xf32>
    %104 = vector.multi_reduction <add>, %103, %cst_64 [1] : vector<8x128xf32> to vector<8xf32>
    %105 = vector.shape_cast %104 : vector<8xf32> to vector<8x1xf32>
    %cst_65 = arith.constant 6.250000e-02 : f32
    %106 = vector.broadcast %cst_65 : f32 to vector<8x1xf32>
    %107 = arith.mulf %105, %106 : vector<8x1xf32>
    %cst_66 = arith.constant 9.99999974E-6 : f32
    %108 = vector.broadcast %cst_66 : f32 to vector<8x1xf32>
    %109 = arith.addf %107, %108 : vector<8x1xf32>
    %110 = math.rsqrt %109 : vector<8x1xf32>
    %111 = vector.broadcast %110 : vector<8x1xf32> to vector<8x128xf32>
    %112 = arith.mulf %102, %111 : vector<8x128xf32>
    %113 = vector.broadcast %84 : vector<1x128xf32> to vector<8x128xf32>
    %114 = arith.mulf %112, %113 : vector<8x128xf32>
    %115 = vector.broadcast %85 : vector<1x128xf32> to vector<8x128xf32>
    %116 = arith.addf %114, %115 : vector<8x128xf32>
    %117 = arith.truncf %40 : vector<8x128xf32> to vector<8x128xbf16>
    %c0_67 = arith.constant 0 : index
    %c0_68 = arith.constant 0 : index
    %118 = vector.load %arg22[%c0_67, %c0_68] : memref<128x128xbf16, #tpu.memory_space<vmem>>, vector<128x128xbf16>
    %cst_69 = arith.constant dense<0.000000e+00> : vector<8x128xf32>
    %119 = tpu.matmul %117, %118, %cst_69 {dimension_numbers = #tpu.dot_dimension_numbers<[1], [0], [0], [1], [0, 0, 1, 1], [], []>} : vector<8x128xbf16>, vector<128x128xbf16>, vector<8x128xf32> -> vector<8x128xf32>
    %120 = arith.truncf %78 : vector<8x128xf32> to vector<8x128xbf16>
    %c0_70 = arith.constant 0 : index
    %c0_71 = arith.constant 0 : index
    %121 = vector.load %arg23[%c0_70, %c0_71] : memref<128x128xbf16, #tpu.memory_space<vmem>>, vector<128x128xbf16>
    %cst_72 = arith.constant dense<0.000000e+00> : vector<8x128xf32>
    %122 = tpu.matmul %120, %121, %cst_72 {dimension_numbers = #tpu.dot_dimension_numbers<[1], [0], [0], [1], [0, 0, 1, 1], [], []>} : vector<8x128xbf16>, vector<128x128xbf16>, vector<8x128xf32> -> vector<8x128xf32>
    %123 = arith.addf %119, %122 : vector<8x128xf32>
    %124 = arith.truncf %116 : vector<8x128xf32> to vector<8x128xbf16>
    %c0_73 = arith.constant 0 : index
    %c0_74 = arith.constant 0 : index
    %125 = vector.load %arg24[%c0_73, %c0_74] : memref<128x128xbf16, #tpu.memory_space<vmem>>, vector<128x128xbf16>
    %cst_75 = arith.constant dense<0.000000e+00> : vector<8x128xf32>
    %126 = tpu.matmul %124, %125, %cst_75 {dimension_numbers = #tpu.dot_dimension_numbers<[1], [0], [0], [1], [0, 0, 1, 1], [], []>} : vector<8x128xbf16>, vector<128x128xbf16>, vector<8x128xf32> -> vector<8x128xf32>
    %127 = arith.addf %123, %126 : vector<8x128xf32>
    %c0_76 = arith.constant 0 : index
    %c0_77 = arith.constant 0 : index
    %128 = vector.load %arg25[%c0_76, %c0_77] : memref<1x128xf32, #tpu.memory_space<vmem>>, vector<1x128xf32>
    %129 = vector.broadcast %128 : vector<1x128xf32> to vector<8x128xf32>
    %130 = arith.addf %127, %129 : vector<8x128xf32>
    %cst_78 = arith.constant 0.000000e+00 : f32
    %131 = vector.broadcast %cst_78 : f32 to vector<8x128xf32>
    %132 = arith.maximumf %130, %131 : vector<8x128xf32>
    %133 = arith.truncf %132 : vector<8x128xf32> to vector<8x128xbf16>
    %c0_79 = arith.constant 0 : index
    %c0_80 = arith.constant 0 : index
    %134 = vector.load %arg26[%c0_79, %c0_80] : memref<128x128xbf16, #tpu.memory_space<vmem>>, vector<128x128xbf16>
    %cst_81 = arith.constant dense<0.000000e+00> : vector<8x128xf32>
    %135 = tpu.matmul %133, %134, %cst_81 {dimension_numbers = #tpu.dot_dimension_numbers<[1], [0], [0], [1], [0, 0, 1, 1], [], []>} : vector<8x128xbf16>, vector<128x128xbf16>, vector<8x128xf32> -> vector<8x128xf32>
    %c0_82 = arith.constant 0 : index
    %c0_83 = arith.constant 0 : index
    %136 = vector.load %arg27[%c0_82, %c0_83] : memref<1x128xf32, #tpu.memory_space<vmem>>, vector<1x128xf32>
    %137 = vector.broadcast %136 : vector<1x128xf32> to vector<8x128xf32>
    %138 = arith.addf %135, %137 : vector<8x128xf32>
    %c0_84 = arith.constant 0 : index
    %c0_85 = arith.constant 0 : index
    %139 = vector.load %arg28[%c0_84, %c0_85] : memref<8x128xf32, #tpu.memory_space<vmem>>, vector<8x128xf32>
    tpu.vector_store %arg28[%c0_84, %c0_85], %138 {strides = array<i32>} : memref<8x128xf32, #tpu.memory_space<vmem>>, vector<8x128xf32>,
    return
  }
  func.func @transform_0(%arg0: i32) -> (i32, i32) {
    %c0_i32 = arith.constant 0 : i32
    %c0_i32_0 = arith.constant 0 : i32
    return %arg0, %c0_i32 : i32, i32
  }
  func.func @transform_1(%arg0: i32) -> (i32, i32) {
    %c0_i32 = arith.constant 0 : i32
    %c0_i32_0 = arith.constant 0 : i32
    return %arg0, %c0_i32 : i32, i32
  }
  func.func @transform_2(%arg0: i32) -> (i32, i32) {
    %c0_i32 = arith.constant 0 : i32
    %c0_i32_0 = arith.constant 0 : i32
    return %arg0, %c0_i32 : i32, i32
  }
  func.func @transform_3(%arg0: i32) -> (i32, i32) {
    %c0_i32 = arith.constant 0 : i32
    %c0_i32_0 = arith.constant 0 : i32
    %c0_i32_1 = arith.constant 0 : i32
    return %c0_i32, %c0_i32_0 : i32, i32
  }
  func.func @transform_4(%arg0: i32) -> (i32, i32) {
    %c0_i32 = arith.constant 0 : i32
    %c0_i32_0 = arith.constant 0 : i32
    %c0_i32_1 = arith.constant 0 : i32
    return %c0_i32, %c0_i32_0 : i32, i32
  }
  func.func @transform_5(%arg0: i32) -> (i32, i32) {
    %c0_i32 = arith.constant 0 : i32
    %c0_i32_0 = arith.constant 0 : i32
    %c0_i32_1 = arith.constant 0 : i32
    return %c0_i32, %c0_i32_0 : i32, i32
  }
  func.func @transform_6(%arg0: i32) -> (i32, i32) {
    %c0_i32 = arith.constant 0 : i32
    %c0_i32_0 = arith.constant 0 : i32
    %c0_i32_1 = arith.constant 0 : i32
    return %c0_i32, %c0_i32_0 : i32, i32
  }
  func.func @transform_7(%arg0: i32) -> (i32, i32) {
    %c0_i32 = arith.constant 0 : i32
    %c0_i32_0 = arith.constant 0 : i32
    %c0_i32_1 = arith.constant 0 : i32
    return %c0_i32, %c0_i32_0 : i32, i32
  }
  func.func @transform_8(%arg0: i32) -> (i32, i32) {
    %c0_i32 = arith.constant 0 : i32
    %c0_i32_0 = arith.constant 0 : i32
    %c0_i32_1 = arith.constant 0 : i32
    return %c0_i32, %c0_i32_0 : i32, i32
  }
  func.func @transform_9(%arg0: i32) -> (i32, i32) {
    %c0_i32 = arith.constant 0 : i32
    %c0_i32_0 = arith.constant 0 : i32
    %c0_i32_1 = arith.constant 0 : i32
    return %c0_i32, %c0_i32_0 : i32, i32
  }
  func.func @transform_10(%arg0: i32) -> (i32, i32) {
    %c0_i32 = arith.constant 0 : i32
    %c0_i32_0 = arith.constant 0 : i32
    %c0_i32_1 = arith.constant 0 : i32
    return %c0_i32, %c0_i32_0 : i32, i32
  }
  func.func @transform_11(%arg0: i32) -> (i32, i32) {
    %c0_i32 = arith.constant 0 : i32
    %c0_i32_0 = arith.constant 0 : i32
    %c0_i32_1 = arith.constant 0 : i32
    return %c0_i32, %c0_i32_0 : i32, i32
  }
  func.func @transform_12(%arg0: i32) -> (i32, i32) {
    %c0_i32 = arith.constant 0 : i32
    %c0_i32_0 = arith.constant 0 : i32
    %c0_i32_1 = arith.constant 0 : i32
    return %c0_i32, %c0_i32_0 : i32, i32
  }
  func.func @transform_13(%arg0: i32) -> (i32, i32) {
    %c0_i32 = arith.constant 0 : i32
    %c0_i32_0 = arith.constant 0 : i32
    %c0_i32_1 = arith.constant 0 : i32
    return %c0_i32, %c0_i32_0 : i32, i32
  }
  func.func @transform_14(%arg0: i32) -> (i32, i32) {
    %c0_i32 = arith.constant 0 : i32
    %c0_i32_0 = arith.constant 0 : i32
    %c0_i32_1 = arith.constant 0 : i32
    return %c0_i32, %c0_i32_0 : i32, i32
  }
  func.func @transform_15(%arg0: i32) -> (i32, i32) {
    %c0_i32 = arith.constant 0 : i32
    %c0_i32_0 = arith.constant 0 : i32
    %c0_i32_1 = arith.constant 0 : i32
    return %c0_i32, %c0_i32_0 : i32, i32
  }
  func.func @transform_16(%arg0: i32) -> (i32, i32) {
    %c0_i32 = arith.constant 0 : i32
    %c0_i32_0 = arith.constant 0 : i32
    %c0_i32_1 = arith.constant 0 : i32
    return %c0_i32, %c0_i32_0 : i32, i32
  }
  func.func @transform_17(%arg0: i32) -> (i32, i32) {
    %c0_i32 = arith.constant 0 : i32
    %c0_i32_0 = arith.constant 0 : i32
    %c0_i32_1 = arith.constant 0 : i32
    return %c0_i32, %c0_i32_0 : i32, i32
  }
  func.func @transform_18(%arg0: i32) -> (i32, i32) {
    %c0_i32 = arith.constant 0 : i32
    %c0_i32_0 = arith.constant 0 : i32
    %c0_i32_1 = arith.constant 0 : i32
    return %c0_i32, %c0_i32_0 : i32, i32
  }
  func.func @transform_19(%arg0: i32) -> (i32, i32) {
    %c0_i32 = arith.constant 0 : i32
    %c0_i32_0 = arith.constant 0 : i32
    %c0_i32_1 = arith.constant 0 : i32
    return %c0_i32, %c0_i32_0 : i32, i32
  }
  func.func @transform_20(%arg0: i32) -> (i32, i32) {
    %c0_i32 = arith.constant 0 : i32
    %c0_i32_0 = arith.constant 0 : i32
    %c0_i32_1 = arith.constant 0 : i32
    return %c0_i32, %c0_i32_0 : i32, i32
  }
  func.func @transform_21(%arg0: i32) -> (i32, i32) {
    %c0_i32 = arith.constant 0 : i32
    %c0_i32_0 = arith.constant 0 : i32
    %c0_i32_1 = arith.constant 0 : i32
    return %c0_i32, %c0_i32_0 : i32, i32
  }
  func.func @transform_22(%arg0: i32) -> (i32, i32) {
    %c0_i32 = arith.constant 0 : i32
    %c0_i32_0 = arith.constant 0 : i32
    %c0_i32_1 = arith.constant 0 : i32
    return %c0_i32, %c0_i32_0 : i32, i32
  }
  func.func @transform_23(%arg0: i32) -> (i32, i32) {
    %c0_i32 = arith.constant 0 : i32
    %c0_i32_0 = arith.constant 0 : i32
    %c0_i32_1 = arith.constant 0 : i32
    return %c0_i32, %c0_i32_0 : i32, i32
  }
  func.func @transform_24(%arg0: i32) -> (i32, i32) {
    %c0_i32 = arith.constant 0 : i32
    %c0_i32_0 = arith.constant 0 : i32
    %c0_i32_1 = arith.constant 0 : i32
    return %c0_i32, %c0_i32_0 : i32, i32
  }
  func.func @transform_25(%arg0: i32) -> (i32, i32) {
    %c0_i32 = arith.constant 0 : i32
    %c0_i32_0 = arith.constant 0 : i32
    %c0_i32_1 = arith.constant 0 : i32
    return %c0_i32, %c0_i32_0 : i32, i32
  }
  func.func @transform_26(%arg0: i32) -> (i32, i32) {
    %c0_i32 = arith.constant 0 : i32
    %c0_i32_0 = arith.constant 0 : i32
    %c0_i32_1 = arith.constant 0 : i32
    return %c0_i32, %c0_i32_0 : i32, i32
  }
  func.func @transform_27(%arg0: i32) -> (i32, i32) {
    %c0_i32 = arith.constant 0 : i32
    %c0_i32_0 = arith.constant 0 : i32
    return %arg0, %c0_i32 : i32, i32
  }
}

</mosaic_0001>

<llo_original>
// kernel: tpu_custom_call.1
$region0: #{tpu_custom_call.1}
  #allocation0 [shape = 'u32[]', space=smem, size = 0x4, offset = 0x4, fixed_abs, tag = 'smem constant byte address 0x4 - core index']
  #allocation1 [shape = 'u32[144,128]{1,0:T(1,128)}', space=vmem, size = 0x12000, scoped, tag = 'internal scratch']
  %s0 = inlined_call_operand.hbm [shape: bf16[8,128], index: 0, kind: input, shape index: {}]
  %s1 = inlined_call_operand.hbm [shape: bf16[8,128], index: 1, kind: input, shape index: {}]
  %s2 = inlined_call_operand.hbm [shape: bf16[8,256], index: 2, kind: input, shape index: {}]
  %s3 = inlined_call_operand.hbm [shape: bf16[128,128], index: 3, kind: input, shape index: {}]
  %s4 = inlined_call_operand.hbm [shape: f32[1,128], index: 4, kind: input, shape index: {}]
  %s5 = inlined_call_operand.hbm [shape: bf16[128,128], index: 5, kind: input, shape index: {}]
  %s6 = inlined_call_operand.hbm [shape: f32[1,128], index: 6, kind: input, shape index: {}]
  %s7 = inlined_call_operand.hbm [shape: f32[1,128], index: 7, kind: input, shape index: {}]
  %s8 = inlined_call_operand.hbm [shape: f32[1,128], index: 8, kind: input, shape index: {}]
  %s9 = inlined_call_operand.hbm [shape: bf16[128,128], index: 9, kind: input, shape index: {}]
  %s10 = inlined_call_operand.hbm [shape: f32[1,128], index: 10, kind: input, shape index: {}]
  %s11 = inlined_call_operand.hbm [shape: bf16[128,128], index: 11, kind: input, shape index: {}]
  %s12 = inlined_call_operand.hbm [shape: f32[1,128], index: 12, kind: input, shape index: {}]
  %s13 = inlined_call_operand.hbm [shape: f32[1,128], index: 13, kind: input, shape index: {}]
  %s14 = inlined_call_operand.hbm [shape: f32[1,128], index: 14, kind: input, shape index: {}]
  %s15 = inlined_call_operand.hbm [shape: bf16[256,128], index: 15, kind: input, shape index: {}]
  %s16 = inlined_call_operand.hbm [shape: f32[1,128], index: 16, kind: input, shape index: {}]
  %s17 = inlined_call_operand.vmem [shape: bf16[128,128], index: 17, kind: input, shape index: {}]
  %s18 = inlined_call_operand.vmem [shape: f32[1,128], index: 18, kind: input, shape index: {}]
  %s19 = inlined_call_operand.vmem [shape: f32[1,128], index: 19, kind: input, shape index: {}]
  %s20 = inlined_call_operand.vmem [shape: f32[1,128], index: 20, kind: input, shape index: {}]
  %s21 = inlined_call_operand.hbm [shape: bf16[128,128], index: 21, kind: input, shape index: {}]
  %s22 = inlined_call_operand.hbm [shape: bf16[128,128], index: 22, kind: input, shape index: {}]
  %s23 = inlined_call_operand.hbm [shape: bf16[128,128], index: 23, kind: input, shape index: {}]
  %s24 = inlined_call_operand.vmem [shape: f32[1,128], index: 24, kind: input, shape index: {}]
  %s25 = inlined_call_operand.hbm [shape: bf16[128,128], index: 25, kind: input, shape index: {}]
  %s26 = inlined_call_operand.vmem [shape: f32[1,128], index: 26, kind: input, shape index: {}]
  %s27 = inlined_call_operand.hbm [shape: f32[8,128], index: 27, kind: output, shape index: {}]
  %s28 = sld [smem:[#allocation0]]
  $region202: #{tpu_custom_call.1} parent=0
    _
  %s30 = ssub.s32 1, %s28
  %s31 = scalar_select 0, %s30, %s28
  $region1: #{tpu_custom_call.1} parent=0
    #allocation2 [shape = 'u8[2048]{0}', space=vmem, size = 0x800, scoped, tag = 'input window, operand 0, single buffered']
    #allocation3 [shape = 's32[1]{0}', space=sflag, size = 0x4, scoped, tag = 'scoped memory for tpu_custom_call.1']
    #allocation4 [shape = 's32[1]{0}', space=sflag, size = 0x4, scoped, tag = 'scoped memory for tpu_custom_call.1']
    #allocation5 [shape = 'u8[2048]{0}', space=vmem, size = 0x800, scoped, tag = 'input window, operand 1, single buffered']
    #allocation6 [shape = 's32[1]{0}', space=sflag, size = 0x4, scoped, tag = 'scoped memory for tpu_custom_call.1']
    #allocation7 [shape = 'u8[4096]{0}', space=vmem, size = 0x1000, scoped, tag = 'input window, operand 2, single buffered']
    #allocation8 [shape = 'u8[32768]{0}', space=vmem, size = 0x8000, scoped, tag = 'input window, operand 3, single buffered']
    #allocation9 [shape = 's32[1]{0}', space=sflag, size = 0x4, scoped, tag = 'scoped memory for tpu_custom_call.1']
    #allocation10 [shape = 'u8[512]{0}', space=vmem, size = 0x400, scoped, tag = 'input window, operand 4, single buffered']
    #allocation11 [shape = 'u8[32768]{0}', space=vmem, size = 0x8000, scoped, tag = 'input window, operand 5, single buffered']
    #allocation12 [shape = 's32[1]{0}', space=sflag, size = 0x4, scoped, tag = 'scoped memory for tpu_custom_call.1']
    #allocation13 [shape = 'u8[512]{0}', space=vmem, size = 0x400, scoped, tag = 'input window, operand 6, single buffered']
    #allocation14 [shape = 'u8[512]{0}', space=vmem, size = 0x400, scoped, tag = 'input window, operand 7, single buffered']
    #allocation15 [shape = 's32[1]{0}', space=sflag, size = 0x4, scoped, tag = 'scoped memory for tpu_custom_call.1']
    #allocation16 [shape = 'u8[512]{0}', space=vmem, size = 0x400, scoped, tag = 'input window, operand 8, single buffered']
    #allocation17 [shape = 'u8[32768]{0}', space=vmem, size = 0x8000, scoped, tag = 'input window, operand 9, single buffered']
    #allocation18 [shape = 's32[1]{0}', space=sflag, size = 0x4, scoped, tag = 'scoped memory for tpu_custom_call.1']
    #allocation19 [shape = 'u8[512]{0}', space=vmem, size = 0x400, scoped, tag = 'input window, operand 10, single buffered']
    #allocation20 [shape = 'u8[32768]{0}', space=vmem, size = 0x8000, scoped, tag = 'input window, operand 11, single buffered']
    #allocation21 [shape = 's32[1]{0}', space=sflag, size = 0x4, scoped, tag = 'scoped memory for tpu_custom_call.1']
    #allocation22 [shape = 'u8[512]{0}', space=vmem, size = 0x400, scoped, tag = 'input window, operand 12, single buffered']
    #allocation23 [shape = 'u8[512]{0}', space=vmem, size = 0x400, scoped, tag = 'input window, operand 13, single buffered']
    #allocation24 [shape = 's32[1]{0}', space=sflag, size = 0x4, scoped, tag = 'scoped memory for tpu_custom_call.1']
    #allocation25 [shape = 'u8[512]{0}', space=vmem, size = 0x400, scoped, tag = 'input window, operand 14, single buffered']
    #allocation26 [shape = 'u8[65536]{0}', space=vmem, size = 0x10000, scoped, tag = 'input window, operand 15, single buffered']
    #allocation27 [shape = 's32[1]{0}', space=sflag, size = 0x4, scoped, tag = 'scoped memory for tpu_custom_call.1']
    #allocation28 [shape = 'u8[512]{0}', space=vmem, size = 0x400, scoped, tag = 'input window, operand 16, single buffered']
    #allocation29 [shape = 'u8[32768]{0}', space=vmem, size = 0x8000, scoped, tag = 'input window, operand 21, single buffered']
    #allocation30 [shape = 's32[1]{0}', space=sflag, size = 0x4, scoped, tag = 'scoped memory for tpu_custom_call.1']
    #allocation31 [shape = 'u8[32768]{0}', space=vmem, size = 0x8000, scoped, tag = 'input window, operand 22, single buffered']
    #allocation32 [shape = 'u8[32768]{0}', space=vmem, size = 0x8000, scoped, tag = 'input window, operand 23, single buffered']
    #allocation33 [shape = 's32[1]{0}', space=sflag, size = 0x4, scoped, tag = 'scoped memory for tpu_custom_call.1']
    #allocation34 [shape = 'u8[32768]{0}', space=vmem, size = 0x8000, scoped, tag = 'input window, operand 25, single buffered']
    #allocation35 [shape = 'u8[4096]{0}', space=vmem, size = 0x1000, scoped, tag = 'output window, operand 0, single buffered']
    %32 = vsyncpa [#allocation3], 0
    %33 = vsyncpa [#allocation6], 0
    %34 = vsyncpa [#allocation9], 0
    %35 = vsyncpa [#allocation12], 0
    %36 = vsyncpa [#allocation15], 0
    %37 = vsyncpa [#allocation18], 0
    %38 = vsyncpa [#allocation21], 0
    %39 = vsyncpa [#allocation24], 0
    %40 = vsyncpa [#allocation27], 0
    %41 = vsyncpa [#allocation30], 0
    %42 = vsyncpa [#allocation33], 0
    %43 = vsyncpa [#allocation4], 0
    // Predicated region
    $region2: #{tpu_custom_call.1} parent=1 // pred_check
      _
    $region3: #{tpu_custom_call.1} parent=1 // pred_check_branch
      %45 = sbr.rel (0) target = $region5
    $region4: #{tpu_custom_call.1} parent=1 // pred_region
      %s47 = ssub.s32 64, 64
      %48 = vsyncadd [#allocation3], %s47
      %s50 = sshll.u32 [#allocation2], 4
      %s51 = int_to_ptr.vmem [resolvable:$true] %s50
      %53 = dma.hbm_to_vmem [thread:$0]  %s0, 64, %s51, [#allocation3]
    $region5: #{tpu_custom_call.1} parent=1 // pred_fallthru
      _
    // Predicated region
    $region6: #{tpu_custom_call.1} parent=1 // pred_check
      _
    $region7: #{tpu_custom_call.1} parent=1 // pred_check_branch
      %55 = sbr.rel (0) target = $region9
    $region8: #{tpu_custom_call.1} parent=1 // pred_region
      %s57 = ssub.s32 64, 64
      %58 = vsyncadd [#allocation6], %s57
      %s60 = sshll.u32 [#allocation5], 4
      %s61 = int_to_ptr.vmem [resolvable:$true] %s60
      %63 = dma.hbm_to_vmem [thread:$0]  %s1, 64, %s61, [#allocation6]
    $region9: #{tpu_custom_call.1} parent=1 // pred_fallthru
      _
    // Predicated region
    $region10: #{tpu_custom_call.1} parent=1 // pred_check
      _
    $region11: #{tpu_custom_call.1} parent=1 // pred_check_branch
      %65 = sbr.rel (0) target = $region13
    $region12: #{tpu_custom_call.1} parent=1 // pred_region
      %s67 = ssub.s32 128, 128
      %68 = vsyncadd [#allocation6], %s67
      %s70 = sshll.u32 [#allocation7], 4
      %s71 = int_to_ptr.vmem [resolvable:$true] %s70
      %73 = dma.hbm_to_vmem [thread:$0]  %s2, 128, %s71, [#allocation6]
    $region13: #{tpu_custom_call.1} parent=1 // pred_fallthru
      _
    // Predicated region
    $region14: #{tpu_custom_call.1} parent=1 // pred_check
      _
    $region15: #{tpu_custom_call.1} parent=1 // pred_check_branch
      %75 = sbr.rel (0) target = $region17
    $region16: #{tpu_custom_call.1} parent=1 // pred_region
      %s77 = ssub.s32 1024, 1024
      %78 = vsyncadd [#allocation9], %s77
      %s79 = sshll.u32 [#allocation8], 4
      %s80 = int_to_ptr.vmem [resolvable:$true] %s79
      %85 = dma.hbm_to_vmem [thread:$0]  %s3, 1024, %s80, [#allocation9], 64, 64, 4
    $region17: #{tpu_custom_call.1} parent=1 // pred_fallthru
      _
    // Predicated region
    $region18: #{tpu_custom_call.1} parent=1 // pred_check
      _
    $region19: #{tpu_custom_call.1} parent=1 // pred_check_branch
      %87 = sbr.rel (0) target = $region21
    $region20: #{tpu_custom_call.1} parent=1 // pred_region
      %s89 = ssub.s32 16, 16
      %90 = vsyncadd [#allocation9], %s89
      %s92 = sshll.u32 [#allocation10], 4
      %s93 = int_to_ptr.vmem [resolvable:$true] %s92
      %95 = dma.hbm_to_vmem [thread:$0]  %s4, 16, %s93, [#allocation9]
    $region21: #{tpu_custom_call.1} parent=1 // pred_fallthru
      _
    // Predicated region
    $region22: #{tpu_custom_call.1} parent=1 // pred_check
      _
    $region23: #{tpu_custom_call.1} parent=1 // pred_check_branch
      %97 = sbr.rel (0) target = $region25
    $region24: #{tpu_custom_call.1} parent=1 // pred_region
      %s99 = ssub.s32 1024, 1024
      %100 = vsyncadd [#allocation12], %s99
      %s101 = sshll.u32 [#allocation11], 4
      %s102 = int_to_ptr.vmem [resolvable:$true] %s101
      %107 = dma.hbm_to_vmem [thread:$0]  %s5, 1024, %s102, [#allocation12], 64, 64, 4
    $region25: #{tpu_custom_call.1} parent=1 // pred_fallthru
      _
    // Predicated region
    $region26: #{tpu_custom_call.1} parent=1 // pred_check
      _
    $region27: #{tpu_custom_call.1} parent=1 // pred_check_branch
      %109 = sbr.rel (0) target = $region29
    $region28: #{tpu_custom_call.1} parent=1 // pred_region
      %s111 = ssub.s32 16, 16
      %112 = vsyncadd [#allocation12], %s111
      %s114 = sshll.u32 [#allocation13], 4
      %s115 = int_to_ptr.vmem [resolvable:$true] %s114
      %117 = dma.hbm_to_vmem [thread:$0]  %s6, 16, %s115, [#allocation12]
    $region29: #{tpu_custom_call.1} parent=1 // pred_fallthru
      _
    // Predicated region
    $region30: #{tpu_custom_call.1} parent=1 // pred_check
      _
    $region31: #{tpu_custom_call.1} parent=1 // pred_check_branch
      %119 = sbr.rel (0) target = $region33
    $region32: #{tpu_custom_call.1} parent=1 // pred_region
      %s121 = ssub.s32 16, 16
      %122 = vsyncadd [#allocation15], %s121
      %s124 = sshll.u32 [#allocation14], 4
      %s125 = int_to_ptr.vmem [resolvable:$true] %s124
      %127 = dma.hbm_to_vmem [thread:$0]  %s7, 16, %s125, [#allocation15]
    $region33: #{tpu_custom_call.1} parent=1 // pred_fallthru
      _
    // Predicated region
    $region34: #{tpu_custom_call.1} parent=1 // pred_check
      _
    $region35: #{tpu_custom_call.1} parent=1 // pred_check_branch
      %129 = sbr.rel (0) target = $region37
    $region36: #{tpu_custom_call.1} parent=1 // pred_region
      %s131 = ssub.s32 16, 16
      %132 = vsyncadd [#allocation15], %s131
      %s134 = sshll.u32 [#allocation16], 4
      %s135 = int_to_ptr.vmem [resolvable:$true] %s134
      %137 = dma.hbm_to_vmem [thread:$0]  %s8, 16, %s135, [#allocation15]
    $region37: #{tpu_custom_call.1} parent=1 // pred_fallthru
      _
    // Predicated region
    $region38: #{tpu_custom_call.1} parent=1 // pred_check
      _
    $region39: #{tpu_custom_call.1} parent=1 // pred_check_branch
      %139 = sbr.rel (0) target = $region41
    $region40: #{tpu_custom_call.1} parent=1 // pred_region
      %s141 = ssub.s32 1024, 1024
      %142 = vsyncadd [#allocation18], %s141
      %s143 = sshll.u32 [#allocation17], 4
      %s144 = int_to_ptr.vmem [resolvable:$true] %s143
      %149 = dma.hbm_to_vmem [thread:$0]  %s9, 1024, %s144, [#allocation18], 64, 64, 4
    $region41: #{tpu_custom_call.1} parent=1 // pred_fallthru
      _
    // Predicated region
    $region42: #{tpu_custom_call.1} parent=1 // pred_check
      _
    $region43: #{tpu_custom_call.1} parent=1 // pred_check_branch
      %151 = sbr.rel (0) target = $region45
    $region44: #{tpu_custom_call.1} parent=1 // pred_region
      %s153 = ssub.s32 16, 16
      %154 = vsyncadd [#allocation18], %s153
      %s156 = sshll.u32 [#allocation19], 4
      %s157 = int_to_ptr.vmem [resolvable:$true] %s156
      %159 = dma.hbm_to_vmem [thread:$0]  %s10, 16, %s157, [#allocation18]
    $region45: #{tpu_custom_call.1} parent=1 // pred_fallthru
      _
    // Predicated region
    $region46: #{tpu_custom_call.1} parent=1 // pred_check
      _
    $region47: #{tpu_custom_call.1} parent=1 // pred_check_branch
      %161 = sbr.rel (0) target = $region49
    $region48: #{tpu_custom_call.1} parent=1 // pred_region
      %s163 = ssub.s32 1024, 1024
      %164 = vsyncadd [#allocation21], %s163
      %s165 = sshll.u32 [#allocation20], 4
      %s166 = int_to_ptr.vmem [resolvable:$true] %s165
      %171 = dma.hbm_to_vmem [thread:$0]  %s11, 1024, %s166, [#allocation21], 64, 64, 4
    $region49: #{tpu_custom_call.1} parent=1 // pred_fallthru
      _
    // Predicated region
    $region50: #{tpu_custom_call.1} parent=1 // pred_check
      _
    $region51: #{tpu_custom_call.1} parent=1 // pred_check_branch
      %173 = sbr.rel (0) target = $region53
    $region52: #{tpu_custom_call.1} parent=1 // pred_region
      %s175 = ssub.s32 16, 16
      %176 = vsyncadd [#allocation21], %s175
      %s178 = sshll.u32 [#allocation22], 4
      %s179 = int_to_ptr.vmem [resolvable:$true] %s178
      %181 = dma.hbm_to_vmem [thread:$0]  %s12, 16, %s179, [#allocation21]
    $region53: #{tpu_custom_call.1} parent=1 // pred_fallthru
      _
    // Predicated region
    $region54: #{tpu_custom_call.1} parent=1 // pred_check
      _
    $region55: #{tpu_custom_call.1} parent=1 // pred_check_branch
      %183 = sbr.rel (0) target = $region57
    $region56: #{tpu_custom_call.1} parent=1 // pred_region
      %s185 = ssub.s32 16, 16
      %186 = vsyncadd [#allocation24], %s185
      %s188 = sshll.u32 [#allocation23], 4
      %s189 = int_to_ptr.vmem [resolvable:$true] %s188
      %191 = dma.hbm_to_vmem [thread:$0]  %s13, 16, %s189, [#allocation24]
    $region57: #{tpu_custom_call.1} parent=1 // pred_fallthru
      _
    // Predicated region
    $region58: #{tpu_custom_call.1} parent=1 // pred_check
      _
    $region59: #{tpu_custom_call.1} parent=1 // pred_check_branch
      %193 = sbr.rel (0) target = $region61
    $region60: #{tpu_custom_call.1} parent=1 // pred_region
      %s195 = ssub.s32 16, 16
      %196 = vsyncadd [#allocation24], %s195
      %s198 = sshll.u32 [#allocation25], 4
      %s199 = int_to_ptr.vmem [resolvable:$true] %s198
      %201 = dma.hbm_to_vmem [thread:$0]  %s14, 16, %s199, [#allocation24]
    $region61: #{tpu_custom_call.1} parent=1 // pred_fallthru
      _
    // Predicated region
    $region62: #{tpu_custom_call.1} parent=1 // pred_check
      _
    $region63: #{tpu_custom_call.1} parent=1 // pred_check_branch
      %203 = sbr.rel (0) target = $region65
    $region64: #{tpu_custom_call.1} parent=1 // pred_region
      %s205 = ssub.s32 2048, 2048
      %206 = vsyncadd [#allocation27], %s205
      %s207 = sshll.u32 [#allocation26], 4
      %s208 = int_to_ptr.vmem [resolvable:$true] %s207
      %213 = dma.hbm_to_vmem [thread:$0]  %s15, 2048, %s208, [#allocation27], 64, 64, 4
    $region65: #{tpu_custom_call.1} parent=1 // pred_fallthru
      _
    // Predicated region
    $region66: #{tpu_custom_call.1} parent=1 // pred_check
      _
    $region67: #{tpu_custom_call.1} parent=1 // pred_check_branch
      %215 = sbr.rel (0) target = $region69
    $region68: #{tpu_custom_call.1} parent=1 // pred_region
      %s217 = ssub.s32 16, 16
      %218 = vsyncadd [#allocation27], %s217
      %s220 = sshll.u32 [#allocation28], 4
      %s221 = int_to_ptr.vmem [resolvable:$true] %s220
      %223 = dma.hbm_to_vmem [thread:$0]  %s16, 16, %s221, [#allocation27]
    $region69: #{tpu_custom_call.1} parent=1 // pred_fallthru
      _
    // Predicated region
    $region70: #{tpu_custom_call.1} parent=1 // pred_check
      _
    $region71: #{tpu_custom_call.1} parent=1 // pred_check_branch
      %225 = sbr.rel (0) target = $region73
    $region72: #{tpu_custom_call.1} parent=1 // pred_region
      _
    $region73: #{tpu_custom_call.1} parent=1 // pred_fallthru
      _
    // Predicated region
    $region74: #{tpu_custom_call.1} parent=1 // pred_check
      _
    $region75: #{tpu_custom_call.1} parent=1 // pred_check_branch
      %227 = sbr.rel (0) target = $region77
    $region76: #{tpu_custom_call.1} parent=1 // pred_region
      _
    $region77: #{tpu_custom_call.1} parent=1 // pred_fallthru
      _
    // Predicated region
    $region78: #{tpu_custom_call.1} parent=1 // pred_check
      _
    $region79: #{tpu_custom_call.1} parent=1 // pred_check_branch
      %229 = sbr.rel (0) target = $region81
    $region80: #{tpu_custom_call.1} parent=1 // pred_region
      _
    $region81: #{tpu_custom_call.1} parent=1 // pred_fallthru
      _
    // Predicated region
    $region82: #{tpu_custom_call.1} parent=1 // pred_check
      _
    $region83: #{tpu_custom_call.1} parent=1 // pred_check_branch
      %231 = sbr.rel (0) target = $region85
    $region84: #{tpu_custom_call.1} parent=1 // pred_region
      _
    $region85: #{tpu_custom_call.1} parent=1 // pred_fallthru
      _
    // Predicated region
    $region86: #{tpu_custom_call.1} parent=1 // pred_check
      _
    $region87: #{tpu_custom_call.1} parent=1 // pred_check_branch
      %233 = sbr.rel (0) target = $region89
    $region88: #{tpu_custom_call.1} parent=1 // pred_region
      %s235 = ssub.s32 1024, 1024
      %236 = vsyncadd [#allocation30], %s235
      %s237 = sshll.u32 [#allocation29], 4
      %s238 = int_to_ptr.vmem [resolvable:$true] %s237
      %243 = dma.hbm_to_vmem [thread:$0]  %s21, 1024, %s238, [#allocation30], 64, 64, 4
    $region89: #{tpu_custom_call.1} parent=1 // pred_fallthru
      _
    // Predicated region
    $region90: #{tpu_custom_call.1} parent=1 // pred_check
      _
    $region91: #{tpu_custom_call.1} parent=1 // pred_check_branch
      %245 = sbr.rel (0) target = $region93
    $region92: #{tpu_custom_call.1} parent=1 // pred_region
      %s247 = ssub.s32 1024, 1024
      %248 = vsyncadd [#allocation30], %s247
      %s249 = sshll.u32 [#allocation31], 4
      %s250 = int_to_ptr.vmem [resolvable:$true] %s249
      %255 = dma.hbm_to_vmem [thread:$0]  %s22, 1024, %s250, [#allocation30], 64, 64, 4
    $region93: #{tpu_custom_call.1} parent=1 // pred_fallthru
      _
    // Predicated region
    $region94: #{tpu_custom_call.1} parent=1 // pred_check
      _
    $region95: #{tpu_custom_call.1} parent=1 // pred_check_branch
      %257 = sbr.rel (0) target = $region97
    $region96: #{tpu_custom_call.1} parent=1 // pred_region
      %s259 = ssub.s32 1024, 1024
      %260 = vsyncadd [#allocation33], %s259
      %s261 = sshll.u32 [#allocation32], 4
      %s262 = int_to_ptr.vmem [resolvable:$true] %s261
      %267 = dma.hbm_to_vmem [thread:$0]  %s23, 1024, %s262, [#allocation33], 64, 64, 4
    $region97: #{tpu_custom_call.1} parent=1 // pred_fallthru
      _
    // Predicated region
    $region98: #{tpu_custom_call.1} parent=1 // pred_check
      _
    $region99: #{tpu_custom_call.1} parent=1 // pred_check_branch
      %269 = sbr.rel (0) target = $region101
    $region100: #{tpu_custom_call.1} parent=1 // pred_region
      _
    $region101: #{tpu_custom_call.1} parent=1 // pred_fallthru
      _
    // Predicated region
    $region102: #{tpu_custom_call.1} parent=1 // pred_check
      _
    $region103: #{tpu_custom_call.1} parent=1 // pred_check_branch
      %271 = sbr.rel (0) target = $region105
    $region104: #{tpu_custom_call.1} parent=1 // pred_region
      %s273 = ssub.s32 1024, 1024
      %274 = vsyncadd [#allocation33], %s273
      %s275 = sshll.u32 [#allocation34], 4
      %s276 = int_to_ptr.vmem [resolvable:$true] %s275
      %281 = dma.hbm_to_vmem [thread:$0]  %s25, 1024, %s276, [#allocation33], 64, 64, 4
    $region105: #{tpu_custom_call.1} parent=1 // pred_fallthru
      _
    // Predicated region
    $region106: #{tpu_custom_call.1} parent=1 // pred_check
      _
    $region107: #{tpu_custom_call.1} parent=1 // pred_check_branch
      %283 = sbr.rel (0) target = $region109
    $region108: #{tpu_custom_call.1} parent=1 // pred_region
      _
    $region109: #{tpu_custom_call.1} parent=1 // pred_fallthru
      _
    // Predicated region
    $region110: #{tpu_custom_call.1} parent=1 // pred_check
      _
    $region111: #{tpu_custom_call.1} parent=1 // pred_check_branch
      %285 = sbr.rel (0) target = $region113
    $region112: #{tpu_custom_call.1} parent=1 // pred_region
      %286 = dma.done [#allocation3], 64
    $region113: #{tpu_custom_call.1} parent=1 // pred_fallthru
      _
    // Predicated region
    $region114: #{tpu_custom_call.1} parent=1 // pred_check
      _
    $region115: #{tpu_custom_call.1} parent=1 // pred_check_branch
      %288 = sbr.rel (0) target = $region117
    $region116: #{tpu_custom_call.1} parent=1 // pred_region
      %289 = dma.done [#allocation6], 64
    $region117: #{tpu_custom_call.1} parent=1 // pred_fallthru
      _
    // Predicated region
    $region118: #{tpu_custom_call.1} parent=1 // pred_check
      _
    $region119: #{tpu_custom_call.1} parent=1 // pred_check_branch
      %291 = sbr.rel (0) target = $region121
    $region120: #{tpu_custom_call.1} parent=1 // pred_region
      %292 = dma.done [#allocation6], 128
    $region121: #{tpu_custom_call.1} parent=1 // pred_fallthru
      _
    // Predicated region
    $region122: #{tpu_custom_call.1} parent=1 // pred_check
      _
    $region123: #{tpu_custom_call.1} parent=1 // pred_check_branch
      %294 = sbr.rel (0) target = $region125
    $region124: #{tpu_custom_call.1} parent=1 // pred_region
      %295 = dma.done [#allocation9], 1024
    $region125: #{tpu_custom_call.1} parent=1 // pred_fallthru
      _
    // Predicated region
    $region126: #{tpu_custom_call.1} parent=1 // pred_check
      _
    $region127: #{tpu_custom_call.1} parent=1 // pred_check_branch
      %297 = sbr.rel (0) target = $region129
    $region128: #{tpu_custom_call.1} parent=1 // pred_region
      %298 = dma.done [#allocation9], 16
    $region129: #{tpu_custom_call.1} parent=1 // pred_fallthru
      _
    // Predicated region
    $region130: #{tpu_custom_call.1} parent=1 // pred_check
      _
    $region131: #{tpu_custom_call.1} parent=1 // pred_check_branch
      %300 = sbr.rel (0) target = $region133
    $region132: #{tpu_custom_call.1} parent=1 // pred_region
      %301 = dma.done [#allocation12], 1024
    $region133: #{tpu_custom_call.1} parent=1 // pred_fallthru
      _
    // Predicated region
    $region134: #{tpu_custom_call.1} parent=1 // pred_check
      _
    $region135: #{tpu_custom_call.1} parent=1 // pred_check_branch
      %303 = sbr.rel (0) target = $region137
    $region136: #{tpu_custom_call.1} parent=1 // pred_region
      %304 = dma.done [#allocation12], 16
    $region137: #{tpu_custom_call.1} parent=1 // pred_fallthru
      _
    // Predicated region
    $region138: #{tpu_custom_call.1} parent=1 // pred_check
      _
    $region139: #{tpu_custom_call.1} parent=1 // pred_check_branch
      %306 = sbr.rel (0) target = $region141
    $region140: #{tpu_custom_call.1} parent=1 // pred_region
      %307 = dma.done [#allocation15], 16
    $region141: #{tpu_custom_call.1} parent=1 // pred_fallthru
      _
    // Predicated region
    $region142: #{tpu_custom_call.1} parent=1 // pred_check
      _
    $region143: #{tpu_custom_call.1} parent=1 // pred_check_branch
      %309 = sbr.rel (0) target = $region145
    $region144: #{tpu_custom_call.1} parent=1 // pred_region
      %310 = dma.done [#allocation15], 16
    $region145: #{tpu_custom_call.1} parent=1 // pred_fallthru
      _
    // Predicated region
    $region146: #{tpu_custom_call.1} parent=1 // pred_check
      _
    $region147: #{tpu_custom_call.1} parent=1 // pred_check_branch
      %312 = sbr.rel (0) target = $region149
    $region148: #{tpu_custom_call.1} parent=1 // pred_region
      %313 = dma.done [#allocation18], 1024
    $region149: #{tpu_custom_call.1} parent=1 // pred_fallthru
      _
    // Predicated region
    $region150: #{tpu_custom_call.1} parent=1 // pred_check
      _
    $region151: #{tpu_custom_call.1} parent=1 // pred_check_branch
      %315 = sbr.rel (0) target = $region153
    $region152: #{tpu_custom_call.1} parent=1 // pred_region
      %316 = dma.done [#allocation18], 16
    $region153: #{tpu_custom_call.1} parent=1 // pred_fallthru
      _
    // Predicated region
    $region154: #{tpu_custom_call.1} parent=1 // pred_check
      _
    $region155: #{tpu_custom_call.1} parent=1 // pred_check_branch
      %318 = sbr.rel (0) target = $region157
    $region156: #{tpu_custom_call.1} parent=1 // pred_region
      %319 = dma.done [#allocation21], 1024
    $region157: #{tpu_custom_call.1} parent=1 // pred_fallthru
      _
    // Predicated region
    $region158: #{tpu_custom_call.1} parent=1 // pred_check
      _
    $region159: #{tpu_custom_call.1} parent=1 // pred_check_branch
      %321 = sbr.rel (0) target = $region161
    $region160: #{tpu_custom_call.1} parent=1 // pred_region
      %322 = dma.done [#allocation21], 16
    $region161: #{tpu_custom_call.1} parent=1 // pred_fallthru
      _
    // Predicated region
    $region162: #{tpu_custom_call.1} parent=1 // pred_check
      _
    $region163: #{tpu_custom_call.1} parent=1 // pred_check_branch
      %324 = sbr.rel (0) target = $region165
    $region164: #{tpu_custom_call.1} parent=1 // pred_region
      %325 = dma.done [#allocation24], 16
    $region165: #{tpu_custom_call.1} parent=1 // pred_fallthru
      _
    // Predicated region
    $region166: #{tpu_custom_call.1} parent=1 // pred_check
      _
    $region167: #{tpu_custom_call.1} parent=1 // pred_check_branch
      %327 = sbr.rel (0) target = $region169
    $region168: #{tpu_custom_call.1} parent=1 // pred_region
      %328 = dma.done [#allocation24], 16
    $region169: #{tpu_custom_call.1} parent=1 // pred_fallthru
      _
    // Predicated region
    $region170: #{tpu_custom_call.1} parent=1 // pred_check
      _
    $region171: #{tpu_custom_call.1} parent=1 // pred_check_branch
      %330 = sbr.rel (0) target = $region173
    $region172: #{tpu_custom_call.1} parent=1 // pred_region
      %331 = dma.done [#allocation27], 2048
    $region173: #{tpu_custom_call.1} parent=1 // pred_fallthru
      _
    // Predicated region
    $region174: #{tpu_custom_call.1} parent=1 // pred_check
      _
    $region175: #{tpu_custom_call.1} parent=1 // pred_check_branch
      %333 = sbr.rel (0) target = $region177
    $region176: #{tpu_custom_call.1} parent=1 // pred_region
      %334 = dma.done [#allocation27], 16
    $region177: #{tpu_custom_call.1} parent=1 // pred_fallthru
      _
    // Predicated region
    $region178: #{tpu_custom_call.1} parent=1 // pred_check
      _
    $region179: #{tpu_custom_call.1} parent=1 // pred_check_branch
      %336 = sbr.rel (0) target = $region181
    $region180: #{tpu_custom_call.1} parent=1 // pred_region
      %337 = dma.done [#allocation30], 1024
    $region181: #{tpu_custom_call.1} parent=1 // pred_fallthru
      _
    // Predicated region
    $region182: #{tpu_custom_call.1} parent=1 // pred_check
      _
    $region183: #{tpu_custom_call.1} parent=1 // pred_check_branch
      %339 = sbr.rel (0) target = $region185
    $region184: #{tpu_custom_call.1} parent=1 // pred_region
      %340 = dma.done [#allocation30], 1024
    $region185: #{tpu_custom_call.1} parent=1 // pred_fallthru
      _
    // Predicated region
    $region186: #{tpu_custom_call.1} parent=1 // pred_check
      _
    $region187: #{tpu_custom_call.1} parent=1 // pred_check_branch
      %342 = sbr.rel (0) target = $region189
    $region188: #{tpu_custom_call.1} parent=1 // pred_region
      %343 = dma.done [#allocation33], 1024
    $region189: #{tpu_custom_call.1} parent=1 // pred_fallthru
      _
    // Predicated region
    $region190: #{tpu_custom_call.1} parent=1 // pred_check
      _
    $region191: #{tpu_custom_call.1} parent=1 // pred_check_branch
      %345 = sbr.rel (0) target = $region193
    $region192: #{tpu_custom_call.1} parent=1 // pred_region
      %346 = dma.done [#allocation33], 1024
    $region193: #{tpu_custom_call.1} parent=1 // pred_fallthru
      _
    %v348 = vlaneseq
    %v349 = vand.u32 %v348, 127
    %vm350 = vcmp.lt.s32.totalorder %v349, 16
    %v351 = vld [vmem:[#allocation2] sm:$0xf]
    %v352 = vld [vmem:[#allocation8] sm:$0xf]
    %v353 = vld [vmem:[#allocation8 + $0x4] sm:$0xf]
    %v354 = vld [vmem:[#allocation8 + $0x8] sm:$0xf]
    %v355 = vld [vmem:[#allocation8 + $0xc] sm:$0xf]
    %v356 = vld [vmem:[#allocation8 + $0x10] sm:$0xf]
    %v357 = vld [vmem:[#allocation8 + $0x14] sm:$0xf]
    %v358 = vld [vmem:[#allocation8 + $0x18] sm:$0xf]
    %v359 = vld [vmem:[#allocation8 + $0x1c] sm:$0xf]
    %v360 = vld [vmem:[#allocation8 + $0x20] sm:$0xf]
    %v361 = vld [vmem:[#allocation8 + $0x24] sm:$0xf]
    %v362 = vld [vmem:[#allocation8 + $0x28] sm:$0xf]
    %v363 = vld [vmem:[#allocation8 + $0x2c] sm:$0xf]
    %v364 = vld [vmem:[#allocation8 + $0x30] sm:$0xf]
    %v365 = vld [vmem:[#allocation8 + $0x34] sm:$0xf]
    %v366 = vld [vmem:[#allocation8 + $0x38] sm:$0xf]
    %v367 = vld [vmem:[#allocation8 + $0x3c] sm:$0xf]
    %v368 = vld [vmem:[#allocation10] sm:$0x1]
    %v369 = vld [vmem:[#allocation11] sm:$0xf]
    %v370 = vld [vmem:[#allocation11 + $0x4] sm:$0xf]
    %v371 = vld [vmem:[#allocation11 + $0x8] sm:$0xf]
    %v372 = vld [vmem:[#allocation11 + $0xc] sm:$0xf]
    %v373 = vld [vmem:[#allocation11 + $0x10] sm:$0xf]
    %v374 = vld [vmem:[#allocation11 + $0x14] sm:$0xf]
    %v375 = vld [vmem:[#allocation11 + $0x18] sm:$0xf]
    %v376 = vld [vmem:[#allocation11 + $0x1c] sm:$0xf]
    %v377 = vld [vmem:[#allocation11 + $0x20] sm:$0xf]
    %v378 = vld [vmem:[#allocation11 + $0x24] sm:$0xf]
    %v379 = vld [vmem:[#allocation11 + $0x28] sm:$0xf]
    %v380 = vld [vmem:[#allocation11 + $0x2c] sm:$0xf]
    %v381 = vld [vmem:[#allocation11 + $0x30] sm:$0xf]
    %v382 = vld [vmem:[#allocation11 + $0x34] sm:$0xf]
    %v383 = vld [vmem:[#allocation11 + $0x38] sm:$0xf]
    %v384 = vld [vmem:[#allocation11 + $0x3c] sm:$0xf]
    %v385 = vld [vmem:[#allocation13] sm:$0x1]
    %v386 = vld [vmem:[#allocation14] sm:$0x1]
    %v387 = vld [vmem:[#allocation16] sm:$0x1]
    %v389 = vlaneseq
    %v390 = vshrl.u32 %v389, 7
    %v391 = vsub.s32 0, %v390
    %v392 = vrot.slane %v368, %v391
    %v410 = vunpack.c.l.b16 %v352
    %v411 = vunpack.c.l.b16 %v353
    %v412 = vunpack.c.l.b16 %v354
    %v413 = vunpack.c.l.b16 %v355
    %v414 = vunpack.c.l.b16 %v356
    %v415 = vunpack.c.l.b16 %v357
    %v416 = vunpack.c.l.b16 %v358
    %v417 = vunpack.c.l.b16 %v359
    %v418 = vunpack.c.l.b16 %v360
    %v419 = vunpack.c.l.b16 %v361
    %v420 = vunpack.c.l.b16 %v362
    %v421 = vunpack.c.l.b16 %v363
    %v422 = vunpack.c.l.b16 %v364
    %v423 = vunpack.c.l.b16 %v365
    %v424 = vunpack.c.l.b16 %v366
    %v425 = vunpack.c.l.b16 %v367
    %v426 = vpack.c.b16 %v411, %v410
    %v427 = vpack.c.b16 %v413, %v412
    %v428 = vpack.c.b16 %v415, %v414
    %v429 = vpack.c.b16 %v417, %v416
    %v430 = vpack.c.b16 %v419, %v418
    %v431 = vpack.c.b16 %v421, %v420
    %v432 = vpack.c.b16 %v423, %v422
    %v433 = vpack.c.b16 %v425, %v424
    %442 = vmatprep.subr.bf16.mxu0 0
    %443 = vmatpush1.bf16.msra.mxu0 %v426
    %444 = vmatprep.subr.bf16.mxu0 0
    %445 = vmatpush1.bf16.msra.mxu0 %v427
    %446 = vmatprep.subr.bf16.mxu0 0
    %447 = vmatpush1.bf16.msra.mxu0 %v428
    %448 = vmatprep.subr.bf16.mxu0 0
    %449 = vmatpush1.bf16.msra.mxu0 %v429
    %450 = vmatprep.subr.bf16.mxu0 0
    %451 = vmatpush1.bf16.msra.mxu0 %v430
    %452 = vmatprep.subr.bf16.mxu0 0
    %453 = vmatpush1.bf16.msra.mxu0 %v431
    %454 = vmatprep.subr.bf16.mxu0 0
    %455 = vmatpush1.bf16.msra.mxu0 %v432
    %456 = vmatprep.subr.bf16.mxu0 0
    %457 = vmatpush1.bf16.msra.mxu0 %v433
    %458 = vmatprep.subr.bf16.mxu0 0
    %459 = vmatpush1.bf16.msra.mxu0 0
    %460 = vmatprep.subr.bf16.mxu0 0
    %461 = vmatpush1.bf16.msra.mxu0 0
    %462 = vmatprep.subr.bf16.mxu0 0
    %463 = vmatpush1.bf16.msra.mxu0 0
    %464 = vmatprep.subr.bf16.mxu0 0
    %465 = vmatpush1.bf16.msra.mxu0 0
    %466 = vmatprep.subr.bf16.mxu0 0
    %467 = vmatpush1.bf16.msra.mxu0 0
    %468 = vmatprep.subr.bf16.mxu0 0
    %469 = vmatpush1.bf16.msra.mxu0 0
    %470 = vmatprep.subr.bf16.mxu0 0
    %471 = vmatpush1.bf16.msra.mxu0 0
    %472 = vmatprep.subr.bf16.mxu0 0
    %473 = vmatpush1.bf16.msra.mxu0 0
    %474 = vmatprep.mubr.bf16.mxu0 0
    %475 = vmatmul.mubr.bf16.gmra.mrb[0].mxu0 %v351
    %v476 = vpop.f32.mrb[0].mxu0
    %v477 = vadd.f32 %v392, %v476
    %v478 = vpop.f32.mrb[0].mxu0
    %v479 = vpop.f32.mrb[0].mxu0
    %v480 = vpop.f32.mrb[0].mxu0
    %481 = vdwg.mxu0
    %v482 = vmax.f32 %v477, 0.0
    %v483 = vpack.c.bf16 %v482, %v482
    %v485 = vlaneseq
    %v486 = vshrl.u32 %v485, 7
    %v487 = vsub.s32 0, %v486
    %v488 = vrot.slane %v385, %v487
    %v506 = vunpack.c.l.b16 %v369
    %v507 = vunpack.c.l.b16 %v370
    %v508 = vunpack.c.l.b16 %v371
    %v509 = vunpack.c.l.b16 %v372
    %v510 = vunpack.c.l.b16 %v373
    %v511 = vunpack.c.l.b16 %v374
    %v512 = vunpack.c.l.b16 %v375
    %v513 = vunpack.c.l.b16 %v376
    %v514 = vunpack.c.l.b16 %v377
    %v515 = vunpack.c.l.b16 %v378
    %v516 = vunpack.c.l.b16 %v379
    %v517 = vunpack.c.l.b16 %v380
    %v518 = vunpack.c.l.b16 %v381
    %v519 = vunpack.c.l.b16 %v382
    %v520 = vunpack.c.l.b16 %v383
    %v521 = vunpack.c.l.b16 %v384
    %v522 = vpack.c.b16 %v507, %v506
    %v523 = vpack.c.b16 %v509, %v508
    %v524 = vpack.c.b16 %v511, %v510
    %v525 = vpack.c.b16 %v513, %v512
    %v526 = vpack.c.b16 %v515, %v514
    %v527 = vpack.c.b16 %v517, %v516
    %v528 = vpack.c.b16 %v519, %v518
    %v529 = vpack.c.b16 %v521, %v520
    %538 = vmatprep.subr.bf16.mxu0 0
    %539 = vmatpush1.bf16.msra.mxu0 %v522
    %540 = vmatprep.subr.bf16.mxu0 0
    %541 = vmatpush1.bf16.msra.mxu0 %v523
    %542 = vmatprep.subr.bf16.mxu0 0
    %543 = vmatpush1.bf16.msra.mxu0 %v524
    %544 = vmatprep.subr.bf16.mxu0 0
    %545 = vmatpush1.bf16.msra.mxu0 %v525
    %546 = vmatprep.subr.bf16.mxu0 0
    %547 = vmatpush1.bf16.msra.mxu0 %v526
    %548 = vmatprep.subr.bf16.mxu0 0
    %549 = vmatpush1.bf16.msra.mxu0 %v527
    %550 = vmatprep.subr.bf16.mxu0 0
    %551 = vmatpush1.bf16.msra.mxu0 %v528
    %552 = vmatprep.subr.bf16.mxu0 0
    %553 = vmatpush1.bf16.msra.mxu0 %v529
    %554 = vmatprep.subr.bf16.mxu0 0
    %555 = vmatpush1.bf16.msra.mxu0 0
    %556 = vmatprep.subr.bf16.mxu0 0
    %557 = vmatpush1.bf16.msra.mxu0 0
    %558 = vmatprep.subr.bf16.mxu0 0
    %559 = vmatpush1.bf16.msra.mxu0 0
    %560 = vmatprep.subr.bf16.mxu0 0
    %561 = vmatpush1.bf16.msra.mxu0 0
    %562 = vmatprep.subr.bf16.mxu0 0
    %563 = vmatpush1.bf16.msra.mxu0 0
    %564 = vmatprep.subr.bf16.mxu0 0
    %565 = vmatpush1.bf16.msra.mxu0 0
    %566 = vmatprep.subr.bf16.mxu0 0
    %567 = vmatpush1.bf16.msra.mxu0 0
    %568 = vmatprep.subr.bf16.mxu0 0
    %569 = vmatpush1.bf16.msra.mxu0 0
    %570 = vmatprep.mubr.bf16.mxu0 0
    %571 = vmatmul.mubr.bf16.gmra.mrb[0].mxu0 %v483
    %v572 = vpop.f32.mrb[0].mxu0
    %v573 = vadd.f32 %v488, %v572
    %v574 = vpop.f32.mrb[0].mxu0
    %v575 = vpop.f32.mrb[0].mxu0
    %v576 = vpop.f32.mrb[0].mxu0
    %577 = vdwg.mxu0
    %578 = vadd.xlane.f32.xlu0 %v573
    %v579 = vpop.xlane.xlu0 %578
    %v580 = vmul.f32 %v579, 0.0625
    %v581 = vsub.f32 %v573, %v580
    %v582 = vsel %vm350, %v581, 0.0
    %v583 = vmul.f32 %v582, %v582
    %584 = vadd.xlane.f32.xlu0 %v583
    %v585 = vpop.xlane.xlu0 %584
    %v586 = vmul.f32 %v585, 0.0625
    %v587 = vadd.f32 %v586, 1e-05
    %v588 = vrsqrt.pop %v587
    %v589 = vmul.f32 %v582, %v588
    %v591 = vlaneseq
    %v592 = vshrl.u32 %v591, 7
    %v593 = vsub.s32 0, %v592
    %v594 = vrot.slane %v386, %v593
    %v596 = vmul.f32 %v589, %v594
    %v598 = vlaneseq
    %v599 = vshrl.u32 %v598, 7
    %v600 = vsub.s32 0, %v599
    %v601 = vrot.slane %v387, %v600
    %v603 = vadd.f32 %v596, %v601
    %v604 = vld [vmem:[#allocation5] sm:$0xf]
    %v605 = vld [vmem:[#allocation17] sm:$0xf]
    %v606 = vld [vmem:[#allocation17 + $0x4] sm:$0xf]
    %v607 = vld [vmem:[#allocation17 + $0x8] sm:$0xf]
    %v608 = vld [vmem:[#allocation17 + $0xc] sm:$0xf]
    %v609 = vld [vmem:[#allocation17 + $0x10] sm:$0xf]
    %v610 = vld [vmem:[#allocation17 + $0x14] sm:$0xf]
    %v611 = vld [vmem:[#allocation17 + $0x18] sm:$0xf]
    %v612 = vld [vmem:[#allocation17 + $0x1c] sm:$0xf]
    %v613 = vld [vmem:[#allocation17 + $0x20] sm:$0xf]
    %v614 = vld [vmem:[#allocation17 + $0x24] sm:$0xf]
    %v615 = vld [vmem:[#allocation17 + $0x28] sm:$0xf]
    %v616 = vld [vmem:[#allocation17 + $0x2c] sm:$0xf]
    %v617 = vld [vmem:[#allocation17 + $0x30] sm:$0xf]
    %v618 = vld [vmem:[#allocation17 + $0x34] sm:$0xf]
    %v619 = vld [vmem:[#allocation17 + $0x38] sm:$0xf]
    %v620 = vld [vmem:[#allocation17 + $0x3c] sm:$0xf]
    %v621 = vld [vmem:[#allocation19] sm:$0x1]
    %v622 = vld [vmem:[#allocation20] sm:$0xf]
    %v623 = vld [vmem:[#allocation20 + $0x4] sm:$0xf]
    %v624 = vld [vmem:[#allocation20 + $0x8] sm:$0xf]
    %v625 = vld [vmem:[#allocation20 + $0xc] sm:$0xf]
    %v626 = vld [vmem:[#allocation20 + $0x10] sm:$0xf]
    %v627 = vld [vmem:[#allocation20 + $0x14] sm:$0xf]
    %v628 = vld [vmem:[#allocation20 + $0x18] sm:$0xf]
    %v629 = vld [vmem:[#allocation20 + $0x1c] sm:$0xf]
    %v630 = vld [vmem:[#allocation20 + $0x20] sm:$0xf]
    %v631 = vld [vmem:[#allocation20 + $0x24] sm:$0xf]
    %v632 = vld [vmem:[#allocation20 + $0x28] sm:$0xf]
    %v633 = vld [vmem:[#allocation20 + $0x2c] sm:$0xf]
    %v634 = vld [vmem:[#allocation20 + $0x30] sm:$0xf]
    %v635 = vld [vmem:[#allocation20 + $0x34] sm:$0xf]
    %v636 = vld [vmem:[#allocation20 + $0x38] sm:$0xf]
    %v637 = vld [vmem:[#allocation20 + $0x3c] sm:$0xf]
    %v638 = vld [vmem:[#allocation22] sm:$0x1]
    %v639 = vld [vmem:[#allocation23] sm:$0x1]
    %v640 = vld [vmem:[#allocation25] sm:$0x1]
    %v642 = vlaneseq
    %v643 = vshrl.u32 %v642, 7
    %v644 = vsub.s32 0, %v643
    %v645 = vrot.slane %v621, %v644
    %v663 = vunpack.c.l.b16 %v605
    %v664 = vunpack.c.l.b16 %v606
    %v665 = vunpack.c.l.b16 %v607
    %v666 = vunpack.c.l.b16 %v608
    %v667 = vunpack.c.l.b16 %v609
    %v668 = vunpack.c.l.b16 %v610
    %v669 = vunpack.c.l.b16 %v611
    %v670 = vunpack.c.l.b16 %v612
    %v671 = vunpack.c.l.b16 %v613
    %v672 = vunpack.c.l.b16 %v614
    %v673 = vunpack.c.l.b16 %v615
    %v674 = vunpack.c.l.b16 %v616
    %v675 = vunpack.c.l.b16 %v617
    %v676 = vunpack.c.l.b16 %v618
    %v677 = vunpack.c.l.b16 %v619
    %v678 = vunpack.c.l.b16 %v620
    %v679 = vpack.c.b16 %v664, %v663
    %v680 = vpack.c.b16 %v666, %v665
    %v681 = vpack.c.b16 %v668, %v667
    %v682 = vpack.c.b16 %v670, %v669
    %v683 = vpack.c.b16 %v672, %v671
    %v684 = vpack.c.b16 %v674, %v673
    %v685 = vpack.c.b16 %v676, %v675
    %v686 = vpack.c.b16 %v678, %v677
    %695 = vmatprep.subr.bf16.mxu0 0
    %696 = vmatpush1.bf16.msra.mxu0 %v679
    %697 = vmatprep.subr.bf16.mxu0 0
    %698 = vmatpush1.bf16.msra.mxu0 %v680
    %699 = vmatprep.subr.bf16.mxu0 0
    %700 = vmatpush1.bf16.msra.mxu0 %v681
    %701 = vmatprep.subr.bf16.mxu0 0
    %702 = vmatpush1.bf16.msra.mxu0 %v682
    %703 = vmatprep.subr.bf16.mxu0 0
    %704 = vmatpush1.bf16.msra.mxu0 %v683
    %705 = vmatprep.subr.bf16.mxu0 0
    %706 = vmatpush1.bf16.msra.mxu0 %v684
    %707 = vmatprep.subr.bf16.mxu0 0
    %708 = vmatpush1.bf16.msra.mxu0 %v685
    %709 = vmatprep.subr.bf16.mxu0 0
    %710 = vmatpush1.bf16.msra.mxu0 %v686
    %711 = vmatprep.subr.bf16.mxu0 0
    %712 = vmatpush1.bf16.msra.mxu0 0
    %713 = vmatprep.subr.bf16.mxu0 0
    %714 = vmatpush1.bf16.msra.mxu0 0
    %715 = vmatprep.subr.bf16.mxu0 0
    %716 = vmatpush1.bf16.msra.mxu0 0
    %717 = vmatprep.subr.bf16.mxu0 0
    %718 = vmatpush1.bf16.msra.mxu0 0
    %719 = vmatprep.subr.bf16.mxu0 0
    %720 = vmatpush1.bf16.msra.mxu0 0
    %721 = vmatprep.subr.bf16.mxu0 0
    %722 = vmatpush1.bf16.msra.mxu0 0
    %723 = vmatprep.subr.bf16.mxu0 0
    %724 = vmatpush1.bf16.msra.mxu0 0
    %725 = vmatprep.subr.bf16.mxu0 0
    %726 = vmatpush1.bf16.msra.mxu0 0
    %727 = vmatprep.mubr.bf16.mxu0 0
    %728 = vmatmul.mubr.bf16.gmra.mrb[0].mxu0 %v604
    %v729 = vpop.f32.mrb[0].mxu0
    %v730 = vadd.f32 %v645, %v729
    %v731 = vpop.f32.mrb[0].mxu0
    %v732 = vpop.f32.mrb[0].mxu0
    %v733 = vpop.f32.mrb[0].mxu0
    %734 = vdwg.mxu0
    %v735 = vmax.f32 %v730, 0.0
    %v736 = vpack.c.bf16 %v735, %v735
    %v738 = vlaneseq
    %v739 = vshrl.u32 %v738, 7
    %v740 = vsub.s32 0, %v739
    %v741 = vrot.slane %v638, %v740
    %v759 = vunpack.c.l.b16 %v622
    %v760 = vunpack.c.l.b16 %v623
    %v761 = vunpack.c.l.b16 %v624
    %v762 = vunpack.c.l.b16 %v625
    %v763 = vunpack.c.l.b16 %v626
    %v764 = vunpack.c.l.b16 %v627
    %v765 = vunpack.c.l.b16 %v628
    %v766 = vunpack.c.l.b16 %v629
    %v767 = vunpack.c.l.b16 %v630
    %v768 = vunpack.c.l.b16 %v631
    %v769 = vunpack.c.l.b16 %v632
    %v770 = vunpack.c.l.b16 %v633
    %v771 = vunpack.c.l.b16 %v634
    %v772 = vunpack.c.l.b16 %v635
    %v773 = vunpack.c.l.b16 %v636
    %v774 = vunpack.c.l.b16 %v637
    %v775 = vpack.c.b16 %v760, %v759
    %v776 = vpack.c.b16 %v762, %v761
    %v777 = vpack.c.b16 %v764, %v763
    %v778 = vpack.c.b16 %v766, %v765
    %v779 = vpack.c.b16 %v768, %v767
    %v780 = vpack.c.b16 %v770, %v769
    %v781 = vpack.c.b16 %v772, %v771
    %v782 = vpack.c.b16 %v774, %v773
    %791 = vmatprep.subr.bf16.mxu0 0
    %792 = vmatpush1.bf16.msra.mxu0 %v775
    %793 = vmatprep.subr.bf16.mxu0 0
    %794 = vmatpush1.bf16.msra.mxu0 %v776
    %795 = vmatprep.subr.bf16.mxu0 0
    %796 = vmatpush1.bf16.msra.mxu0 %v777
    %797 = vmatprep.subr.bf16.mxu0 0
    %798 = vmatpush1.bf16.msra.mxu0 %v778
    %799 = vmatprep.subr.bf16.mxu0 0
    %800 = vmatpush1.bf16.msra.mxu0 %v779
    %801 = vmatprep.subr.bf16.mxu0 0
    %802 = vmatpush1.bf16.msra.mxu0 %v780
    %803 = vmatprep.subr.bf16.mxu0 0
    %804 = vmatpush1.bf16.msra.mxu0 %v781
    %805 = vmatprep.subr.bf16.mxu0 0
    %806 = vmatpush1.bf16.msra.mxu0 %v782
    %807 = vmatprep.subr.bf16.mxu0 0
    %808 = vmatpush1.bf16.msra.mxu0 0
    %809 = vmatprep.subr.bf16.mxu0 0
    %810 = vmatpush1.bf16.msra.mxu0 0
    %811 = vmatprep.subr.bf16.mxu0 0
    %812 = vmatpush1.bf16.msra.mxu0 0
    %813 = vmatprep.subr.bf16.mxu0 0
    %814 = vmatpush1.bf16.msra.mxu0 0
    %815 = vmatprep.subr.bf16.mxu0 0
    %816 = vmatpush1.bf16.msra.mxu0 0
    %817 = vmatprep.subr.bf16.mxu0 0
    %818 = vmatpush1.bf16.msra.mxu0 0
    %819 = vmatprep.subr.bf16.mxu0 0
    %820 = vmatpush1.bf16.msra.mxu0 0
    %821 = vmatprep.subr.bf16.mxu0 0
    %822 = vmatpush1.bf16.msra.mxu0 0
    %823 = vmatprep.mubr.bf16.mxu0 0
    %824 = vmatmul.mubr.bf16.gmra.mrb[0].mxu0 %v736
    %v825 = vpop.f32.mrb[0].mxu0
    %v826 = vadd.f32 %v741, %v825
    %v827 = vpop.f32.mrb[0].mxu0
    %v828 = vpop.f32.mrb[0].mxu0
    %v829 = vpop.f32.mrb[0].mxu0
    %830 = vdwg.mxu0
    %831 = vadd.xlane.f32.xlu0 %v826
    %v832 = vpop.xlane.xlu0 %831
    %v833 = vmul.f32 %v832, 0.0625
    %v834 = vsub.f32 %v826, %v833
    %v835 = vsel %vm350, %v834, 0.0
    %v836 = vmul.f32 %v835, %v835
    %837 = vadd.xlane.f32.xlu0 %v836
    %v838 = vpop.xlane.xlu0 %837
    %v839 = vmul.f32 %v838, 0.0625
    %v840 = vadd.f32 %v839, 1e-05
    %v841 = vrsqrt.pop %v840
    %v842 = vmul.f32 %v835, %v841
    %v844 = vlaneseq
    %v845 = vshrl.u32 %v844, 7
    %v846 = vsub.s32 0, %v845
    %v847 = vrot.slane %v639, %v846
    %v849 = vmul.f32 %v842, %v847
    %v851 = vlaneseq
    %v852 = vshrl.u32 %v851, 7
    %v853 = vsub.s32 0, %v852
    %v854 = vrot.slane %v640, %v853
    %v856 = vadd.f32 %v849, %v854
    %v857 = vld [vmem:[#allocation7] sm:$0xff]
    %v858 = vld [vmem:[#allocation26] sm:$0xf]
    %v859 = vld [vmem:[#allocation26 + $0x4] sm:$0xf]
    %v860 = vld [vmem:[#allocation26 + $0x8] sm:$0xf]
    %v861 = vld [vmem:[#allocation26 + $0xc] sm:$0xf]
    %v862 = vld [vmem:[#allocation26 + $0x10] sm:$0xf]
    %v863 = vld [vmem:[#allocation26 + $0x14] sm:$0xf]
    %v864 = vld [vmem:[#allocation26 + $0x18] sm:$0xf]
    %v865 = vld [vmem:[#allocation26 + $0x1c] sm:$0xf]
    %v866 = vld [vmem:[#allocation26 + $0x20] sm:$0xf]
    %v867 = vld [vmem:[#allocation26 + $0x24] sm:$0xf]
    %v868 = vld [vmem:[#allocation26 + $0x28] sm:$0xf]
    %v869 = vld [vmem:[#allocation26 + $0x2c] sm:$0xf]
    %v870 = vld [vmem:[#allocation26 + $0x30] sm:$0xf]
    %v871 = vld [vmem:[#allocation26 + $0x34] sm:$0xf]
    %v872 = vld [vmem:[#allocation26 + $0x38] sm:$0xf]
    %v873 = vld [vmem:[#allocation26 + $0x3c] sm:$0xf]
    %v874 = vld [vmem:[#allocation26 + $0x40] sm:$0xf]
    %v875 = vld [vmem:[#allocation26 + $0x44] sm:$0xf]
    %v876 = vld [vmem:[#allocation26 + $0x48] sm:$0xf]
    %v877 = vld [vmem:[#allocation26 + $0x4c] sm:$0xf]
    %v878 = vld [vmem:[#allocation26 + $0x50] sm:$0xf]
    %v879 = vld [vmem:[#allocation26 + $0x54] sm:$0xf]
    %v880 = vld [vmem:[#allocation26 + $0x58] sm:$0xf]
    %v881 = vld [vmem:[#allocation26 + $0x5c] sm:$0xf]
    %v882 = vld [vmem:[#allocation26 + $0x60] sm:$0xf]
    %v883 = vld [vmem:[#allocation26 + $0x64] sm:$0xf]
    %v884 = vld [vmem:[#allocation26 + $0x68] sm:$0xf]
    %v885 = vld [vmem:[#allocation26 + $0x6c] sm:$0xf]
    %v886 = vld [vmem:[#allocation26 + $0x70] sm:$0xf]
    %v887 = vld [vmem:[#allocation26 + $0x74] sm:$0xf]
    %v888 = vld [vmem:[#allocation26 + $0x78] sm:$0xf]
    %v889 = vld [vmem:[#allocation26 + $0x7c] sm:$0xf]
    %v890 = vld [vmem:[#allocation28] sm:$0x1]
    %v891 = vld [vmem:[%s17] sm:$0xf]
    %v892 = vld [vmem:[%s17 + $0x4] sm:$0xf]
    %v893 = vld [vmem:[%s17 + $0x8] sm:$0xf]
    %v894 = vld [vmem:[%s17 + $0xc] sm:$0xf]
    %v895 = vld [vmem:[%s17 + $0x10] sm:$0xf]
    %v896 = vld [vmem:[%s17 + $0x14] sm:$0xf]
    %v897 = vld [vmem:[%s17 + $0x18] sm:$0xf]
    %v898 = vld [vmem:[%s17 + $0x1c] sm:$0xf]
    %v899 = vld [vmem:[%s17 + $0x20] sm:$0xf]
    %v900 = vld [vmem:[%s17 + $0x24] sm:$0xf]
    %v901 = vld [vmem:[%s17 + $0x28] sm:$0xf]
    %v902 = vld [vmem:[%s17 + $0x2c] sm:$0xf]
    %v903 = vld [vmem:[%s17 + $0x30] sm:$0xf]
    %v904 = vld [vmem:[%s17 + $0x34] sm:$0xf]
    %v905 = vld [vmem:[%s17 + $0x38] sm:$0xf]
    %v906 = vld [vmem:[%s17 + $0x3c] sm:$0xf]
    %v907 = vld [vmem:[%s18] sm:$0x1]
    %v908 = vld [vmem:[%s19] sm:$0x1]
    %v909 = vld [vmem:[%s20] sm:$0x1]
    %v911 = vlaneseq
    %v912 = vshrl.u32 %v911, 7
    %v913 = vsub.s32 0, %v912
    %v914 = vrot.slane %v890, %v913
    %v917 = vunpack.c.l.b16 %v857
    %v918 = vunpack.c.h.b16 %v857
    %v919 = vpack.c.b16 %v917, %v917
    %v920 = vpack.c.b16 %v918, %v918
    %v955 = vunpack.c.l.b16 %v858
    %v956 = vunpack.c.l.b16 %v859
    %v957 = vunpack.c.l.b16 %v860
    %v958 = vunpack.c.l.b16 %v861
    %v959 = vunpack.c.l.b16 %v862
    %v960 = vunpack.c.l.b16 %v863
    %v961 = vunpack.c.l.b16 %v864
    %v962 = vunpack.c.l.b16 %v865
    %v963 = vunpack.c.l.b16 %v866
    %v964 = vunpack.c.l.b16 %v867
    %v965 = vunpack.c.l.b16 %v868
    %v966 = vunpack.c.l.b16 %v869
    %v967 = vunpack.c.l.b16 %v870
    %v968 = vunpack.c.l.b16 %v871
    %v969 = vunpack.c.l.b16 %v872
    %v970 = vunpack.c.l.b16 %v873
    %v971 = vunpack.c.l.b16 %v874
    %v972 = vunpack.c.l.b16 %v875
    %v973 = vunpack.c.l.b16 %v876
    %v974 = vunpack.c.l.b16 %v877
    %v975 = vunpack.c.l.b16 %v878
    %v976 = vunpack.c.l.b16 %v879
    %v977 = vunpack.c.l.b16 %v880
    %v978 = vunpack.c.l.b16 %v881
    %v979 = vunpack.c.l.b16 %v882
    %v980 = vunpack.c.l.b16 %v883
    %v981 = vunpack.c.l.b16 %v884
    %v982 = vunpack.c.l.b16 %v885
    %v983 = vunpack.c.l.b16 %v886
    %v984 = vunpack.c.l.b16 %v887
    %v985 = vunpack.c.l.b16 %v888
    %v986 = vunpack.c.l.b16 %v889
    %v987 = vpack.c.b16 %v956, %v955
    %v988 = vpack.c.b16 %v958, %v957
    %v989 = vpack.c.b16 %v960, %v959
    %v990 = vpack.c.b16 %v962, %v961
    %v991 = vpack.c.b16 %v964, %v963
    %v992 = vpack.c.b16 %v966, %v965
    %v993 = vpack.c.b16 %v968, %v967
    %v994 = vpack.c.b16 %v970, %v969
    %v995 = vpack.c.b16 %v972, %v971
    %v996 = vpack.c.b16 %v974, %v973
    %v997 = vpack.c.b16 %v976, %v975
    %v998 = vpack.c.b16 %v978, %v977
    %v999 = vpack.c.b16 %v980, %v979
    %v1000 = vpack.c.b16 %v982, %v981
    %v1001 = vpack.c.b16 %v984, %v983
    %v1002 = vpack.c.b16 %v986, %v985
    %1019 = vmatprep.subr.bf16.mxu0 0
    %1020 = vmatpush1.bf16.msra.mxu0 %v987
    %1021 = vmatprep.subr.bf16.mxu0 0
    %1022 = vmatpush1.bf16.msra.mxu0 %v988
    %1023 = vmatprep.subr.bf16.mxu0 0
    %1024 = vmatpush1.bf16.msra.mxu0 %v989
    %1025 = vmatprep.subr.bf16.mxu0 0
    %1026 = vmatpush1.bf16.msra.mxu0 %v990
    %1027 = vmatprep.subr.bf16.mxu0 0
    %1028 = vmatpush1.bf16.msra.mxu0 %v991
    %1029 = vmatprep.subr.bf16.mxu0 0
    %1030 = vmatpush1.bf16.msra.mxu0 %v992
    %1031 = vmatprep.subr.bf16.mxu0 0
    %1032 = vmatpush1.bf16.msra.mxu0 %v993
    %1033 = vmatprep.subr.bf16.mxu0 0
    %1034 = vmatpush1.bf16.msra.mxu0 %v994
    %1035 = vmatprep.subr.bf16.mxu0 0
    %1036 = vmatpush1.bf16.msra.mxu0 %v995
    %1037 = vmatprep.subr.bf16.mxu0 0
    %1038 = vmatpush1.bf16.msra.mxu0 %v996
    %1039 = vmatprep.subr.bf16.mxu0 0
    %1040 = vmatpush1.bf16.msra.mxu0 %v997
    %1041 = vmatprep.subr.bf16.mxu0 0
    %1042 = vmatpush1.bf16.msra.mxu0 %v998
    %1043 = vmatprep.subr.bf16.mxu0 0
    %1044 = vmatpush1.bf16.msra.mxu0 %v999
    %1045 = vmatprep.subr.bf16.mxu0 0
    %1046 = vmatpush1.bf16.msra.mxu0 %v1000
    %1047 = vmatprep.subr.bf16.mxu0 0
    %1048 = vmatpush1.bf16.msra.mxu0 %v1001
    %1049 = vmatprep.subr.bf16.mxu0 0
    %1050 = vmatpush1.bf16.msra.mxu0 %v1002
    %1051 = vmatprep.mubr.bf16.mxu0 %v920
    %1052 = vmatmul.mubr.bf16.gmra.mrb[0].mxu0 %v919
    %v1053 = vpop.f32.mrb[0].mxu0
    %v1054 = vadd.f32 %v914, %v1053
    %v1055 = vpop.f32.mrb[0].mxu0
    %v1056 = vpop.f32.mrb[0].mxu0
    %v1057 = vpop.f32.mrb[0].mxu0
    %1058 = vdwg.mxu0
    %v1059 = vmax.f32 %v1054, 0.0
    %v1060 = vpack.c.bf16 %v1059, %v1059
    %v1062 = vlaneseq
    %v1063 = vshrl.u32 %v1062, 7
    %v1064 = vsub.s32 0, %v1063
    %v1065 = vrot.slane %v907, %v1064
    %v1083 = vunpack.c.l.b16 %v891
    %v1084 = vunpack.c.l.b16 %v892
    %v1085 = vunpack.c.l.b16 %v893
    %v1086 = vunpack.c.l.b16 %v894
    %v1087 = vunpack.c.l.b16 %v895
    %v1088 = vunpack.c.l.b16 %v896
    %v1089 = vunpack.c.l.b16 %v897
    %v1090 = vunpack.c.l.b16 %v898
    %v1091 = vunpack.c.l.b16 %v899
    %v1092 = vunpack.c.l.b16 %v900
    %v1093 = vunpack.c.l.b16 %v901
    %v1094 = vunpack.c.l.b16 %v902
    %v1095 = vunpack.c.l.b16 %v903
    %v1096 = vunpack.c.l.b16 %v904
    %v1097 = vunpack.c.l.b16 %v905
    %v1098 = vunpack.c.l.b16 %v906
    %v1099 = vpack.c.b16 %v1084, %v1083
    %v1100 = vpack.c.b16 %v1086, %v1085
    %v1101 = vpack.c.b16 %v1088, %v1087
    %v1102 = vpack.c.b16 %v1090, %v1089
    %v1103 = vpack.c.b16 %v1092, %v1091
    %v1104 = vpack.c.b16 %v1094, %v1093
    %v1105 = vpack.c.b16 %v1096, %v1095
    %v1106 = vpack.c.b16 %v1098, %v1097
    %1115 = vmatprep.subr.bf16.mxu0 0
    %1116 = vmatpush1.bf16.msra.mxu0 %v1099
    %1117 = vmatprep.subr.bf16.mxu0 0
    %1118 = vmatpush1.bf16.msra.mxu0 %v1100
    %1119 = vmatprep.subr.bf16.mxu0 0
    %1120 = vmatpush1.bf16.msra.mxu0 %v1101
    %1121 = vmatprep.subr.bf16.mxu0 0
    %1122 = vmatpush1.bf16.msra.mxu0 %v1102
    %1123 = vmatprep.subr.bf16.mxu0 0
    %1124 = vmatpush1.bf16.msra.mxu0 %v1103
    %1125 = vmatprep.subr.bf16.mxu0 0
    %1126 = vmatpush1.bf16.msra.mxu0 %v1104
    %1127 = vmatprep.subr.bf16.mxu0 0
    %1128 = vmatpush1.bf16.msra.mxu0 %v1105
    %1129 = vmatprep.subr.bf16.mxu0 0
    %1130 = vmatpush1.bf16.msra.mxu0 %v1106
    %1131 = vmatprep.subr.bf16.mxu0 0
    %1132 = vmatpush1.bf16.msra.mxu0 0
    %1133 = vmatprep.subr.bf16.mxu0 0
    %1134 = vmatpush1.bf16.msra.mxu0 0
    %1135 = vmatprep.subr.bf16.mxu0 0
    %1136 = vmatpush1.bf16.msra.mxu0 0
    %1137 = vmatprep.subr.bf16.mxu0 0
    %1138 = vmatpush1.bf16.msra.mxu0 0
    %1139 = vmatprep.subr.bf16.mxu0 0
    %1140 = vmatpush1.bf16.msra.mxu0 0
    %1141 = vmatprep.subr.bf16.mxu0 0
    %1142 = vmatpush1.bf16.msra.mxu0 0
    %1143 = vmatprep.subr.bf16.mxu0 0
    %1144 = vmatpush1.bf16.msra.mxu0 0
    %1145 = vmatprep.subr.bf16.mxu0 0
    %1146 = vmatpush1.bf16.msra.mxu0 0
    %1147 = vmatprep.mubr.bf16.mxu0 0
    %1148 = vmatmul.mubr.bf16.gmra.mrb[0].mxu0 %v1060
    %v1149 = vpop.f32.mrb[0].mxu0
    %v1150 = vadd.f32 %v1065, %v1149
    %v1151 = vpop.f32.mrb[0].mxu0
    %v1152 = vpop.f32.mrb[0].mxu0
    %v1153 = vpop.f32.mrb[0].mxu0
    %1154 = vdwg.mxu0
    %1155 = vadd.xlane.f32.xlu0 %v1150
    %v1156 = vpop.xlane.xlu0 %1155
    %v1157 = vmul.f32 %v1156, 0.0625
    %v1158 = vsub.f32 %v1150, %v1157
    %v1159 = vsel %vm350, %v1158, 0.0
    %v1160 = vmul.f32 %v1159, %v1159
    %1161 = vadd.xlane.f32.xlu0 %v1160
    %v1162 = vpop.xlane.xlu0 %1161
    %v1163 = vmul.f32 %v1162, 0.0625
    %v1164 = vadd.f32 %v1163, 1e-05
    %v1165 = vrsqrt.pop %v1164
    %v1166 = vmul.f32 %v1159, %v1165
    %v1168 = vlaneseq
    %v1169 = vshrl.u32 %v1168, 7
    %v1170 = vsub.s32 0, %v1169
    %v1171 = vrot.slane %v908, %v1170
    %v1173 = vmul.f32 %v1166, %v1171
    %v1175 = vlaneseq
    %v1176 = vshrl.u32 %v1175, 7
    %v1177 = vsub.s32 0, %v1176
    %v1178 = vrot.slane %v909, %v1177
    %v1180 = vadd.f32 %v1173, %v1178
    %v1181 = vpack.c.bf16 %v603, %v603
    %v1182 = vld [vmem:[#allocation29] sm:$0xf]
    %v1183 = vld [vmem:[#allocation29 + $0x4] sm:$0xf]
    %v1184 = vld [vmem:[#allocation29 + $0x8] sm:$0xf]
    %v1185 = vld [vmem:[#allocation29 + $0xc] sm:$0xf]
    %v1186 = vld [vmem:[#allocation29 + $0x10] sm:$0xf]
    %v1187 = vld [vmem:[#allocation29 + $0x14] sm:$0xf]
    %v1188 = vld [vmem:[#allocation29 + $0x18] sm:$0xf]
    %v1189 = vld [vmem:[#allocation29 + $0x1c] sm:$0xf]
    %v1190 = vld [vmem:[#allocation29 + $0x20] sm:$0xf]
    %v1191 = vld [vmem:[#allocation29 + $0x24] sm:$0xf]
    %v1192 = vld [vmem:[#allocation29 + $0x28] sm:$0xf]
    %v1193 = vld [vmem:[#allocation29 + $0x2c] sm:$0xf]
    %v1194 = vld [vmem:[#allocation29 + $0x30] sm:$0xf]
    %v1195 = vld [vmem:[#allocation29 + $0x34] sm:$0xf]
    %v1196 = vld [vmem:[#allocation29 + $0x38] sm:$0xf]
    %v1197 = vld [vmem:[#allocation29 + $0x3c] sm:$0xf]
    %v1198 = vpack.c.bf16 %v856, %v856
    %v1199 = vld [vmem:[#allocation31] sm:$0xf]
    %v1200 = vld [vmem:[#allocation31 + $0x4] sm:$0xf]
    %v1201 = vld [vmem:[#allocation31 + $0x8] sm:$0xf]
    %v1202 = vld [vmem:[#allocation31 + $0xc] sm:$0xf]
    %v1203 = vld [vmem:[#allocation31 + $0x10] sm:$0xf]
    %v1204 = vld [vmem:[#allocation31 + $0x14] sm:$0xf]
    %v1205 = vld [vmem:[#allocation31 + $0x18] sm:$0xf]
    %v1206 = vld [vmem:[#allocation31 + $0x1c] sm:$0xf]
    %v1207 = vld [vmem:[#allocation31 + $0x20] sm:$0xf]
    %v1208 = vld [vmem:[#allocation31 + $0x24] sm:$0xf]
    %v1209 = vld [vmem:[#allocation31 + $0x28] sm:$0xf]
    %v1210 = vld [vmem:[#allocation31 + $0x2c] sm:$0xf]
    %v1211 = vld [vmem:[#allocation31 + $0x30] sm:$0xf]
    %v1212 = vld [vmem:[#allocation31 + $0x34] sm:$0xf]
    %v1213 = vld [vmem:[#allocation31 + $0x38] sm:$0xf]
    %v1214 = vld [vmem:[#allocation31 + $0x3c] sm:$0xf]
    %v1231 = vunpack.c.l.b16 %v1199
    %v1232 = vunpack.c.l.b16 %v1200
    %v1233 = vunpack.c.l.b16 %v1201
    %v1234 = vunpack.c.l.b16 %v1202
    %v1235 = vunpack.c.l.b16 %v1203
    %v1236 = vunpack.c.l.b16 %v1204
    %v1237 = vunpack.c.l.b16 %v1205
    %v1238 = vunpack.c.l.b16 %v1206
    %v1239 = vunpack.c.l.b16 %v1207
    %v1240 = vunpack.c.l.b16 %v1208
    %v1241 = vunpack.c.l.b16 %v1209
    %v1242 = vunpack.c.l.b16 %v1210
    %v1243 = vunpack.c.l.b16 %v1211
    %v1244 = vunpack.c.l.b16 %v1212
    %v1245 = vunpack.c.l.b16 %v1213
    %v1246 = vunpack.c.l.b16 %v1214
    %v1247 = vpack.c.b16 %v1232, %v1231
    %v1248 = vpack.c.b16 %v1234, %v1233
    %v1249 = vpack.c.b16 %v1236, %v1235
    %v1250 = vpack.c.b16 %v1238, %v1237
    %v1251 = vpack.c.b16 %v1240, %v1239
    %v1252 = vpack.c.b16 %v1242, %v1241
    %v1253 = vpack.c.b16 %v1244, %v1243
    %v1254 = vpack.c.b16 %v1246, %v1245
    %1263 = vmatprep.subr.bf16.mxu0 0
    %1264 = vmatpush1.bf16.msra.mxu0 %v1247
    %1265 = vmatprep.subr.bf16.mxu0 0
    %1266 = vmatpush1.bf16.msra.mxu0 %v1248
    %1267 = vmatprep.subr.bf16.mxu0 0
    %1268 = vmatpush1.bf16.msra.mxu0 %v1249
    %1269 = vmatprep.subr.bf16.mxu0 0
    %1270 = vmatpush1.bf16.msra.mxu0 %v1250
    %1271 = vmatprep.subr.bf16.mxu0 0
    %1272 = vmatpush1.bf16.msra.mxu0 %v1251
    %1273 = vmatprep.subr.bf16.mxu0 0
    %1274 = vmatpush1.bf16.msra.mxu0 %v1252
    %1275 = vmatprep.subr.bf16.mxu0 0
    %1276 = vmatpush1.bf16.msra.mxu0 %v1253
    %1277 = vmatprep.subr.bf16.mxu0 0
    %1278 = vmatpush1.bf16.msra.mxu0 %v1254
    %1279 = vmatprep.subr.bf16.mxu0 0
    %1280 = vmatpush1.bf16.msra.mxu0 0
    %1281 = vmatprep.subr.bf16.mxu0 0
    %1282 = vmatpush1.bf16.msra.mxu0 0
    %1283 = vmatprep.subr.bf16.mxu0 0
    %1284 = vmatpush1.bf16.msra.mxu0 0
    %1285 = vmatprep.subr.bf16.mxu0 0
    %1286 = vmatpush1.bf16.msra.mxu0 0
    %1287 = vmatprep.subr.bf16.mxu0 0
    %1288 = vmatpush1.bf16.msra.mxu0 0
    %1289 = vmatprep.subr.bf16.mxu0 0
    %1290 = vmatpush1.bf16.msra.mxu0 0
    %1291 = vmatprep.subr.bf16.mxu0 0
    %1292 = vmatpush1.bf16.msra.mxu0 0
    %1293 = vmatprep.subr.bf16.mxu0 0
    %1294 = vmatpush1.bf16.msra.mxu0 0
    %1295 = vmatprep.mubr.bf16.mxu0 0
    %1296 = vmatmul.mubr.bf16.gmra.mrb[0].mxu0 %v1198
    %v1297 = vpop.f32.mrb[0].mxu0
    %v1298 = vadd.f32 0.0, %v1297
    %v1299 = vpop.f32.mrb[0].mxu0
    %v1300 = vpop.f32.mrb[0].mxu0
    %v1301 = vpop.f32.mrb[0].mxu0
    %1302 = vdwg.mxu0
    %v1319 = vunpack.c.l.b16 %v1182
    %v1320 = vunpack.c.l.b16 %v1183
    %v1321 = vunpack.c.l.b16 %v1184
    %v1322 = vunpack.c.l.b16 %v1185
    %v1323 = vunpack.c.l.b16 %v1186
    %v1324 = vunpack.c.l.b16 %v1187
    %v1325 = vunpack.c.l.b16 %v1188
    %v1326 = vunpack.c.l.b16 %v1189
    %v1327 = vunpack.c.l.b16 %v1190
    %v1328 = vunpack.c.l.b16 %v1191
    %v1329 = vunpack.c.l.b16 %v1192
    %v1330 = vunpack.c.l.b16 %v1193
    %v1331 = vunpack.c.l.b16 %v1194
    %v1332 = vunpack.c.l.b16 %v1195
    %v1333 = vunpack.c.l.b16 %v1196
    %v1334 = vunpack.c.l.b16 %v1197
    %v1335 = vpack.c.b16 %v1320, %v1319
    %v1336 = vpack.c.b16 %v1322, %v1321
    %v1337 = vpack.c.b16 %v1324, %v1323
    %v1338 = vpack.c.b16 %v1326, %v1325
    %v1339 = vpack.c.b16 %v1328, %v1327
    %v1340 = vpack.c.b16 %v1330, %v1329
    %v1341 = vpack.c.b16 %v1332, %v1331
    %v1342 = vpack.c.b16 %v1334, %v1333
    %1351 = vmatprep.subr.bf16.mxu0 0
    %1352 = vmatpush1.bf16.msra.mxu0 %v1335
    %1353 = vmatprep.subr.bf16.mxu0 0
    %1354 = vmatpush1.bf16.msra.mxu0 %v1336
    %1355 = vmatprep.subr.bf16.mxu0 0
    %1356 = vmatpush1.bf16.msra.mxu0 %v1337
    %1357 = vmatprep.subr.bf16.mxu0 0
    %1358 = vmatpush1.bf16.msra.mxu0 %v1338
    %1359 = vmatprep.subr.bf16.mxu0 0
    %1360 = vmatpush1.bf16.msra.mxu0 %v1339
    %1361 = vmatprep.subr.bf16.mxu0 0
    %1362 = vmatpush1.bf16.msra.mxu0 %v1340
    %1363 = vmatprep.subr.bf16.mxu0 0
    %1364 = vmatpush1.bf16.msra.mxu0 %v1341
    %1365 = vmatprep.subr.bf16.mxu0 0
    %1366 = vmatpush1.bf16.msra.mxu0 %v1342
    %1367 = vmatprep.subr.bf16.mxu0 0
    %1368 = vmatpush1.bf16.msra.mxu0 0
    %1369 = vmatprep.subr.bf16.mxu0 0
    %1370 = vmatpush1.bf16.msra.mxu0 0
    %1371 = vmatprep.subr.bf16.mxu0 0
    %1372 = vmatpush1.bf16.msra.mxu0 0
    %1373 = vmatprep.subr.bf16.mxu0 0
    %1374 = vmatpush1.bf16.msra.mxu0 0
    %1375 = vmatprep.subr.bf16.mxu0 0
    %1376 = vmatpush1.bf16.msra.mxu0 0
    %1377 = vmatprep.subr.bf16.mxu0 0
    %1378 = vmatpush1.bf16.msra.mxu0 0
    %1379 = vmatprep.subr.bf16.mxu0 0
    %1380 = vmatpush1.bf16.msra.mxu0 0
    %1381 = vmatprep.subr.bf16.mxu0 0
    %1382 = vmatpush1.bf16.msra.mxu0 0
    %1383 = vmatprep.mubr.bf16.mxu0 0
    %1384 = vmatmul.mubr.bf16.gmra.mrb[0].mxu0 %v1181
    %v1385 = vpop.f32.mrb[0].mxu0
    %v1386 = vadd.f32 %v1298, %v1385
    %v1387 = vpop.f32.mrb[0].mxu0
    %v1388 = vpop.f32.mrb[0].mxu0
    %v1389 = vpop.f32.mrb[0].mxu0
    %1390 = vdwg.mxu0
    %v1391 = vpack.c.bf16 %v1180, %v1180
    %v1392 = vld [vmem:[#allocation32] sm:$0xf]
    %v1393 = vld [vmem:[#allocation32 + $0x4] sm:$0xf]
    %v1394 = vld [vmem:[#allocation32 + $0x8] sm:$0xf]
    %v1395 = vld [vmem:[#allocation32 + $0xc] sm:$0xf]
    %v1396 = vld [vmem:[#allocation32 + $0x10] sm:$0xf]
    %v1397 = vld [vmem:[#allocation32 + $0x14] sm:$0xf]
    %v1398 = vld [vmem:[#allocation32 + $0x18] sm:$0xf]
    %v1399 = vld [vmem:[#allocation32 + $0x1c] sm:$0xf]
    %v1400 = vld [vmem:[#allocation32 + $0x20] sm:$0xf]
    %v1401 = vld [vmem:[#allocation32 + $0x24] sm:$0xf]
    %v1402 = vld [vmem:[#allocation32 + $0x28] sm:$0xf]
    %v1403 = vld [vmem:[#allocation32 + $0x2c] sm:$0xf]
    %v1404 = vld [vmem:[#allocation32 + $0x30] sm:$0xf]
    %v1405 = vld [vmem:[#allocation32 + $0x34] sm:$0xf]
    %v1406 = vld [vmem:[#allocation32 + $0x38] sm:$0xf]
    %v1407 = vld [vmem:[#allocation32 + $0x3c] sm:$0xf]
    %v1424 = vunpack.c.l.b16 %v1392
    %v1425 = vunpack.c.l.b16 %v1393
    %v1426 = vunpack.c.l.b16 %v1394
    %v1427 = vunpack.c.l.b16 %v1395
    %v1428 = vunpack.c.l.b16 %v1396
    %v1429 = vunpack.c.l.b16 %v1397
    %v1430 = vunpack.c.l.b16 %v1398
    %v1431 = vunpack.c.l.b16 %v1399
    %v1432 = vunpack.c.l.b16 %v1400
    %v1433 = vunpack.c.l.b16 %v1401
    %v1434 = vunpack.c.l.b16 %v1402
    %v1435 = vunpack.c.l.b16 %v1403
    %v1436 = vunpack.c.l.b16 %v1404
    %v1437 = vunpack.c.l.b16 %v1405
    %v1438 = vunpack.c.l.b16 %v1406
    %v1439 = vunpack.c.l.b16 %v1407
    %v1440 = vpack.c.b16 %v1425, %v1424
    %v1441 = vpack.c.b16 %v1427, %v1426
    %v1442 = vpack.c.b16 %v1429, %v1428
    %v1443 = vpack.c.b16 %v1431, %v1430
    %v1444 = vpack.c.b16 %v1433, %v1432
    %v1445 = vpack.c.b16 %v1435, %v1434
    %v1446 = vpack.c.b16 %v1437, %v1436
    %v1447 = vpack.c.b16 %v1439, %v1438
    %1456 = vmatprep.subr.bf16.mxu0 0
    %1457 = vmatpush1.bf16.msra.mxu0 %v1440
    %1458 = vmatprep.subr.bf16.mxu0 0
    %1459 = vmatpush1.bf16.msra.mxu0 %v1441
    %1460 = vmatprep.subr.bf16.mxu0 0
    %1461 = vmatpush1.bf16.msra.mxu0 %v1442
    %1462 = vmatprep.subr.bf16.mxu0 0
    %1463 = vmatpush1.bf16.msra.mxu0 %v1443
    %1464 = vmatprep.subr.bf16.mxu0 0
    %1465 = vmatpush1.bf16.msra.mxu0 %v1444
    %1466 = vmatprep.subr.bf16.mxu0 0
    %1467 = vmatpush1.bf16.msra.mxu0 %v1445
    %1468 = vmatprep.subr.bf16.mxu0 0
    %1469 = vmatpush1.bf16.msra.mxu0 %v1446
    %1470 = vmatprep.subr.bf16.mxu0 0
    %1471 = vmatpush1.bf16.msra.mxu0 %v1447
    %1472 = vmatprep.subr.bf16.mxu0 0
    %1473 = vmatpush1.bf16.msra.mxu0 0
    %1474 = vmatprep.subr.bf16.mxu0 0
    %1475 = vmatpush1.bf16.msra.mxu0 0
    %1476 = vmatprep.subr.bf16.mxu0 0
    %1477 = vmatpush1.bf16.msra.mxu0 0
    %1478 = vmatprep.subr.bf16.mxu0 0
    %1479 = vmatpush1.bf16.msra.mxu0 0
    %1480 = vmatprep.subr.bf16.mxu0 0
    %1481 = vmatpush1.bf16.msra.mxu0 0
    %1482 = vmatprep.subr.bf16.mxu0 0
    %1483 = vmatpush1.bf16.msra.mxu0 0
    %1484 = vmatprep.subr.bf16.mxu0 0
    %1485 = vmatpush1.bf16.msra.mxu0 0
    %1486 = vmatprep.subr.bf16.mxu0 0
    %1487 = vmatpush1.bf16.msra.mxu0 0
    %1488 = vmatprep.mubr.bf16.mxu0 0
    %1489 = vmatmul.mubr.bf16.gmra.mrb[0].mxu0 %v1391
    %v1490 = vpop.f32.mrb[0].mxu0
    %v1491 = vadd.f32 0.0, %v1490
    %v1492 = vpop.f32.mrb[0].mxu0
    %v1493 = vpop.f32.mrb[0].mxu0
    %v1494 = vpop.f32.mrb[0].mxu0
    %1495 = vdwg.mxu0
    %v1496 = vadd.f32 %v1386, %v1491
    %v1497 = vld [vmem:[%s24] sm:$0x1]
    %v1499 = vlaneseq
    %v1500 = vshrl.u32 %v1499, 7
    %v1501 = vsub.s32 0, %v1500
    %v1502 = vrot.slane %v1497, %v1501
    %v1504 = vadd.f32 %v1496, %v1502
    %v1505 = vmax.f32 %v1504, 0.0
    %v1506 = vpack.c.bf16 %v1505, %v1505
    %v1507 = vld [vmem:[#allocation34] sm:$0xf]
    %v1508 = vld [vmem:[#allocation34 + $0x4] sm:$0xf]
    %v1509 = vld [vmem:[#allocation34 + $0x8] sm:$0xf]
    %v1510 = vld [vmem:[#allocation34 + $0xc] sm:$0xf]
    %v1511 = vld [vmem:[#allocation34 + $0x10] sm:$0xf]
    %v1512 = vld [vmem:[#allocation34 + $0x14] sm:$0xf]
    %v1513 = vld [vmem:[#allocation34 + $0x18] sm:$0xf]
    %v1514 = vld [vmem:[#allocation34 + $0x1c] sm:$0xf]
    %v1515 = vld [vmem:[#allocation34 + $0x20] sm:$0xf]
    %v1516 = vld [vmem:[#allocation34 + $0x24] sm:$0xf]
    %v1517 = vld [vmem:[#allocation34 + $0x28] sm:$0xf]
    %v1518 = vld [vmem:[#allocation34 + $0x2c] sm:$0xf]
    %v1519 = vld [vmem:[#allocation34 + $0x30] sm:$0xf]
    %v1520 = vld [vmem:[#allocation34 + $0x34] sm:$0xf]
    %v1521 = vld [vmem:[#allocation34 + $0x38] sm:$0xf]
    %v1522 = vld [vmem:[#allocation34 + $0x3c] sm:$0xf]
    %v1523 = vld [vmem:[%s26] sm:$0x1]
    %v1525 = vlaneseq
    %v1526 = vshrl.u32 %v1525, 7
    %v1527 = vsub.s32 0, %v1526
    %v1528 = vrot.slane %v1523, %v1527
    %v1546 = vunpack.c.l.b16 %v1507
    %v1547 = vunpack.c.l.b16 %v1508
    %v1548 = vunpack.c.l.b16 %v1509
    %v1549 = vunpack.c.l.b16 %v1510
    %v1550 = vunpack.c.l.b16 %v1511
    %v1551 = vunpack.c.l.b16 %v1512
    %v1552 = vunpack.c.l.b16 %v1513
    %v1553 = vunpack.c.l.b16 %v1514
    %v1554 = vunpack.c.l.b16 %v1515
    %v1555 = vunpack.c.l.b16 %v1516
    %v1556 = vunpack.c.l.b16 %v1517
    %v1557 = vunpack.c.l.b16 %v1518
    %v1558 = vunpack.c.l.b16 %v1519
    %v1559 = vunpack.c.l.b16 %v1520
    %v1560 = vunpack.c.l.b16 %v1521
    %v1561 = vunpack.c.l.b16 %v1522
    %v1562 = vpack.c.b16 %v1547, %v1546
    %v1563 = vpack.c.b16 %v1549, %v1548
    %v1564 = vpack.c.b16 %v1551, %v1550
    %v1565 = vpack.c.b16 %v1553, %v1552
    %v1566 = vpack.c.b16 %v1555, %v1554
    %v1567 = vpack.c.b16 %v1557, %v1556
    %v1568 = vpack.c.b16 %v1559, %v1558
    %v1569 = vpack.c.b16 %v1561, %v1560
    %1578 = vmatprep.subr.bf16.mxu0 0
    %1579 = vmatpush1.bf16.msra.mxu0 %v1562
    %1580 = vmatprep.subr.bf16.mxu0 0
    %1581 = vmatpush1.bf16.msra.mxu0 %v1563
    %1582 = vmatprep.subr.bf16.mxu0 0
    %1583 = vmatpush1.bf16.msra.mxu0 %v1564
    %1584 = vmatprep.subr.bf16.mxu0 0
    %1585 = vmatpush1.bf16.msra.mxu0 %v1565
    %1586 = vmatprep.subr.bf16.mxu0 0
    %1587 = vmatpush1.bf16.msra.mxu0 %v1566
    %1588 = vmatprep.subr.bf16.mxu0 0
    %1589 = vmatpush1.bf16.msra.mxu0 %v1567
    %1590 = vmatprep.subr.bf16.mxu0 0
    %1591 = vmatpush1.bf16.msra.mxu0 %v1568
    %1592 = vmatprep.subr.bf16.mxu0 0
    %1593 = vmatpush1.bf16.msra.mxu0 %v1569
    %1594 = vmatprep.subr.bf16.mxu0 0
    %1595 = vmatpush1.bf16.msra.mxu0 0
    %1596 = vmatprep.subr.bf16.mxu0 0
    %1597 = vmatpush1.bf16.msra.mxu0 0
    %1598 = vmatprep.subr.bf16.mxu0 0
    %1599 = vmatpush1.bf16.msra.mxu0 0
    %1600 = vmatprep.subr.bf16.mxu0 0
    %1601 = vmatpush1.bf16.msra.mxu0 0
    %1602 = vmatprep.subr.bf16.mxu0 0
    %1603 = vmatpush1.bf16.msra.mxu0 0
    %1604 = vmatprep.subr.bf16.mxu0 0
    %1605 = vmatpush1.bf16.msra.mxu0 0
    %1606 = vmatprep.subr.bf16.mxu0 0
    %1607 = vmatpush1.bf16.msra.mxu0 0
    %1608 = vmatprep.subr.bf16.mxu0 0
    %1609 = vmatpush1.bf16.msra.mxu0 0
    %1610 = vmatprep.mubr.bf16.mxu0 0
    %1611 = vmatmul.mubr.bf16.gmra.mrb[0].mxu0 %v1506
    %v1612 = vpop.f32.mrb[0].mxu0
    %v1613 = vadd.f32 %v1528, %v1612
    %v1614 = vpop.f32.mrb[0].mxu0
    %v1615 = vpop.f32.mrb[0].mxu0
    %v1616 = vpop.f32.mrb[0].mxu0
    %1617 = vdwg.mxu0
    %1618 = vst [vmem:[#allocation35] sm:$0xff] %v1613
    // Predicated region
    $region194: #{tpu_custom_call.1} parent=1 // pred_check
      _
    $region195: #{tpu_custom_call.1} parent=1 // pred_check_branch
      %1620 = sbr.rel (0) target = $region197
    $region196: #{tpu_custom_call.1} parent=1 // pred_region
      %s1622 = ssub.s32 128, 128
      %1623 = vsyncadd [#allocation4], %s1622
      %s1625 = sshll.u32 [#allocation35], 4
      %s1626 = int_to_ptr.vmem [resolvable:$true] %s1625
      %1628 = dma.vmem_to_hbm [thread:$0]  %s1626, 128, %s27, [#allocation4]
    $region197: #{tpu_custom_call.1} parent=1 // pred_fallthru
      _
    // Predicated region
    $region198: #{tpu_custom_call.1} parent=1 // pred_check
      _
    $region199: #{tpu_custom_call.1} parent=1 // pred_check_branch
      %1630 = sbr.rel (0) target = $region201
    $region200: #{tpu_custom_call.1} parent=1 // pred_region
      %1631 = dma.done [#allocation4], 128
    $region201: #{tpu_custom_call.1} parent=1 // pred_fallthru
      _
    %1632 = vsyncpa [#allocation3], 1
    %1633 = vsyncpa [#allocation6], 1
    %1634 = vsyncpa [#allocation9], 1
    %1635 = vsyncpa [#allocation12], 1
    %1636 = vsyncpa [#allocation15], 1
    %1637 = vsyncpa [#allocation18], 1
    %1638 = vsyncpa [#allocation21], 1
    %1639 = vsyncpa [#allocation24], 1
    %1640 = vsyncpa [#allocation27], 1
    %1641 = vsyncpa [#allocation30], 1
    %1642 = vsyncpa [#allocation33], 1
    %1643 = vsyncpa [#allocation4], 1

</llo_original>
